<compile_context>
chip_gen: v5e
topology: v5e:2x2
jax: 0.10.0
libtpu: 0.0.40
codegen_flags: <defaults>
</compile_context>

<pallas_src>
import functools
import math

import jax
import jax.numpy as jnp
from jax import lax
from jax.experimental import pallas as pl
from jax.experimental.pallas import tpu as pltpu


# --------------------------- fused QKV projection ---------------------------

def _qkv_proj_kernel(x_ref, wq_ref, wk_ref, wv_ref, b_ref,
                     q_ref, k_ref, v_ref, accq, acck, accv):
    k_idx = pl.program_id(1)

    @pl.when(k_idx == 0)
    def _init():
        accq[...] = jnp.zeros_like(accq)
        acck[...] = jnp.zeros_like(acck)
        accv[...] = jnp.zeros_like(accv)

    xb = x_ref[...].astype(jnp.bfloat16)
    accq[...] += jnp.dot(xb, wq_ref[...].astype(jnp.bfloat16),
                         preferred_element_type=jnp.float32)
    acck[...] += jnp.dot(xb, wk_ref[...].astype(jnp.bfloat16),
                         preferred_element_type=jnp.float32)
    accv[...] += jnp.dot(xb, wv_ref[...].astype(jnp.bfloat16),
                         preferred_element_type=jnp.float32)

    @pl.when(k_idx == pl.num_programs(1) - 1)
    def _finalize():
        q_ref[...] = (accq[...] + b_ref[0:1, :]).astype(q_ref.dtype)
        k_ref[...] = (acck[...] + b_ref[1:2, :]).astype(k_ref.dtype)
        v_ref[...] = (accv[...] + b_ref[2:3, :]).astype(v_ref.dtype)


def qkv_projection(x2d, wq, wk, wv, b_qkv, *, tm=128, tk=128):
    """x2d: (M, D); weights: (D, D); b_qkv: (3, D) -> (q, k, v), each (M, D)."""
    M, D = x2d.shape
    tm = min(tm, M)
    tk = min(tk, D)
    assert M % tm == 0 and D % tk == 0
    grid = (M // tm, D // tk)
    cost = pl.CostEstimate(flops=2 * 3 * M * D * D, transcendentals=0,
                           bytes_accessed=4 * (M * D + 3 * D * D + 3 * M * D))
    return pl.pallas_call(
        _qkv_proj_kernel,
        out_shape=(jax.ShapeDtypeStruct((M, D), x2d.dtype),
                   jax.ShapeDtypeStruct((M, D), x2d.dtype),
                   jax.ShapeDtypeStruct((M, D), x2d.dtype)),
        grid_spec=pltpu.PrefetchScalarGridSpec(
            num_scalar_prefetch=0,
            grid=grid,
            in_specs=[
                pl.BlockSpec((tm, tk), lambda i, kk: (i, kk)),
                pl.BlockSpec((tk, D), lambda i, kk: (kk, 0)),
                pl.BlockSpec((tk, D), lambda i, kk: (kk, 0)),
                pl.BlockSpec((tk, D), lambda i, kk: (kk, 0)),
                pl.BlockSpec((3, D), lambda i, kk: (0, 0)),
            ],
            out_specs=(
                pl.BlockSpec((tm, D), lambda i, kk: (i, 0)),
                pl.BlockSpec((tm, D), lambda i, kk: (i, 0)),
                pl.BlockSpec((tm, D), lambda i, kk: (i, 0)),
            ),
            scratch_shapes=[pltpu.VMEM((tm, D), jnp.float32),
                            pltpu.VMEM((tm, D), jnp.float32),
                            pltpu.VMEM((tm, D), jnp.float32)],
        ),
        compiler_params=pltpu.CompilerParams(
            dimension_semantics=("parallel", "arbitrary")),
        cost_estimate=cost,
    )(x2d, wq, wk, wv, b_qkv)


# ------------------------------ tiled linear --------------------------------

def _linear_kernel(x_ref, w_ref, b_ref, o_ref, acc_ref):
    k_idx = pl.program_id(2)

    @pl.when(k_idx == 0)
    def _init():
        acc_ref[...] = jnp.zeros_like(acc_ref)

    acc_ref[...] += jnp.dot(x_ref[...].astype(jnp.bfloat16),
                            w_ref[...].astype(jnp.bfloat16),
                            preferred_element_type=jnp.float32)

    @pl.when(k_idx == pl.num_programs(2) - 1)
    def _finalize():
        o_ref[...] = (acc_ref[...] + b_ref[...]).astype(o_ref.dtype)


def pallas_linear(x2d, w, b, *, tm=128, tn=128, tk=128):
    """x2d: (M, K), w: (K, N), b: (N,) -> (M, N).  Tiled M/N/K with f32 acc."""
    M, K = x2d.shape
    _, N = w.shape
    tm = min(tm, M)
    tn = min(tn, N)
    tk = min(tk, K)
    assert M % tm == 0 and N % tn == 0 and K % tk == 0
    grid = (M // tm, N // tn, K // tk)
    cost = pl.CostEstimate(flops=2 * M * N * K, transcendentals=0,
                           bytes_accessed=4 * (M * K + K * N + M * N))
    return pl.pallas_call(
        _linear_kernel,
        out_shape=jax.ShapeDtypeStruct((M, N), x2d.dtype),
        grid_spec=pltpu.PrefetchScalarGridSpec(
            num_scalar_prefetch=0,
            grid=grid,
            in_specs=[
                pl.BlockSpec((tm, tk), lambda i, j, kk: (i, kk)),
                pl.BlockSpec((tk, tn), lambda i, j, kk: (kk, j)),
                pl.BlockSpec((1, tn), lambda i, j, kk: (0, j)),
            ],
            out_specs=pl.BlockSpec((tm, tn), lambda i, j, kk: (i, j)),
            scratch_shapes=[pltpu.VMEM((tm, tn), jnp.float32)],
        ),
        compiler_params=pltpu.CompilerParams(
            dimension_semantics=("parallel", "parallel", "arbitrary")),
        cost_estimate=cost,
    )(x2d, w, b.reshape(1, N))


# --------------------------- flash multi-head attn --------------------------

def _flash_mha_kernel(q_ref, k_ref, v_ref, o_ref, m_ref, l_ref, acc_ref,
                      *, num_heads, d_k):
    # Blocks: q (1, tq, D), k/v (1, tkv, D), out (1, tq, D) with D = h*d_k.
    # Heads are packed in the last (lane) dim; all heads handled per grid step.
    kv_idx = pl.program_id(2)

    @pl.when(kv_idx == 0)
    def _init():
        m_ref[...] = jnp.full_like(m_ref, -jnp.inf)
        l_ref[...] = jnp.zeros_like(l_ref)
        acc_ref[...] = jnp.zeros_like(acc_ref)

    scale = 1.0 / math.sqrt(d_k)

    for head in range(num_heads):          # static unroll over heads
        hs = head * d_k
        he = hs + d_k
        # Fold the 1/sqrt(d_k) scale into q (S*d_k mults, not S*S).
        qh = (q_ref[0, :, hs:he] * scale).astype(jnp.bfloat16)   # (tq, d_k)
        kh = k_ref[0, :, hs:he].astype(jnp.bfloat16)             # (tkv, d_k)
        vh = v_ref[0, :, hs:he].astype(jnp.bfloat16)             # (tkv, d_k)

        # Contract last dims of q and k directly (no explicit k transpose).
        s = lax.dot_general(qh, kh, (((1,), (1,)), ((), ())),
                            preferred_element_type=jnp.float32)  # (tq, tkv)

        m_prev = m_ref[head]                                     # (tq, 1)
        m_new = jnp.maximum(m_prev, jnp.max(s, axis=-1, keepdims=True))
        alpha = jnp.exp(m_prev - m_new)
        p = jnp.exp(s - m_new)                                   # (tq, tkv) f32

        l_ref[head] = alpha * l_ref[head] + jnp.sum(p, axis=-1, keepdims=True)
        pv = jnp.dot(p.astype(jnp.bfloat16), vh,
                     preferred_element_type=jnp.float32)         # (tq, d_k)
        acc_ref[:, hs:he] = alpha * acc_ref[:, hs:he] + pv
        m_ref[head] = m_new

    @pl.when(kv_idx == pl.num_programs(2) - 1)
    def _finalize():
        tq = acc_ref.shape[0]
        # Build a full-width (tq, D) reciprocal so the output store is one
        # lane-dense write instead of per-head masked partial stores.
        inv_l = jnp.concatenate(
            [jnp.broadcast_to(pl.reciprocal(l_ref[head], approx=True),
                              (tq, d_k))
             for head in range(num_heads)], axis=-1)             # (tq, D)
        o_ref[0] = (acc_ref[...] * inv_l).astype(o_ref.dtype)


def flash_mha(q, k, v, *, num_heads, tq=128, tkv=128):
    """q, k, v: (B, S, D) with heads packed in D -> (B, S, D)."""
    B, S, D = q.shape
    assert D % num_heads == 0
    d_k = D // num_heads
    tq = min(tq, S)
    tkv = min(tkv, S)
    assert S % tq == 0 and S % tkv == 0
    grid = (B, S // tq, S // tkv)
    kernel = functools.partial(_flash_mha_kernel, num_heads=num_heads, d_k=d_k)
    cost = pl.CostEstimate(flops=4 * B * S * S * D,
                           transcendentals=B * num_heads * S * S,
                           bytes_accessed=4 * 4 * B * S * D)
    return pl.pallas_call(
        kernel,
        out_shape=jax.ShapeDtypeStruct((B, S, D), q.dtype),
        grid_spec=pltpu.PrefetchScalarGridSpec(
            num_scalar_prefetch=0,
            grid=grid,
            in_specs=[
                pl.BlockSpec((1, tq, D), lambda b, qi, ki: (b, qi, 0)),
                pl.BlockSpec((1, tkv, D), lambda b, qi, ki: (b, ki, 0)),
                pl.BlockSpec((1, tkv, D), lambda b, qi, ki: (b, ki, 0)),
            ],
            out_specs=pl.BlockSpec((1, tq, D), lambda b, qi, ki: (b, qi, 0)),
            scratch_shapes=[
                pltpu.VMEM((num_heads, tq, 1), jnp.float32),   # m (running max)
                pltpu.VMEM((num_heads, tq, 1), jnp.float32),   # l (running sum)
                pltpu.VMEM((tq, D), jnp.float32),              # acc (all heads)
            ],
        ),
        compiler_params=pltpu.CompilerParams(
            dimension_semantics=("parallel", "parallel", "arbitrary")),
        cost_estimate=cost,
    )(q, k, v)


# ------------------------------ module forward -------------------------------

def multi_headed_attention(params, query, key, value, h, mask=None):
    """Forward pass of MultiHeadedAttention (mask=None, dropout=identity)."""
    # TODO(synk): attention `mask` (masked_fill with -1e9) not wired into the
    #             flash kernel; only the mask=None path is implemented.
    assert mask is None
    B, S, D = query.shape

    b_qkv = jnp.stack([params["bq"], params["bk"], params["bv"]])   # (3, D)
    if (query is key) and (key is value):
        # BERT self-attention: read the activation once, fused Q/K/V matmul.
        q2d, k2d, v2d = qkv_projection(query.reshape(B * S, D),
                                       params["wq"], params["wk"],
                                       params["wv"], b_qkv)
    else:
        # General (cross-attention style) inputs: three tiled projections.
        q2d = pallas_linear(query.reshape(B * S, D), params["wq"], params["bq"])
        k2d = pallas_linear(key.reshape(B * S, D), params["wk"], params["bk"])
        v2d = pallas_linear(value.reshape(B * S, D), params["wv"], params["bv"])

    # No head-split transposes: keep [B, S, h*d_k]; kernel slices heads.
    q = q2d.reshape(B, S, D)
    k = k2d.reshape(B, S, D)
    v = v2d.reshape(B, S, D)

    ctx = flash_mha(q, k, v, num_heads=h)                           # (B, S, D)
    out = pallas_linear(ctx.reshape(B * S, D), params["wo"], params["bo"])
    return out.reshape(B, S, D)


# -------------------------------- reference ----------------------------------

def reference(params, query, key, value, h):
    B, S, D = query.shape
    d_k = D // h

    def lin(x, w, b):
        return x @ w + b

    def split(x):
        return x.reshape(B, S, h, d_k).transpose(0, 2, 1, 3)

    q = split(lin(query, params["wq"], params["bq"]))
    k = split(lin(key, params["wk"], params["bk"]))
    v = split(lin(value, params["wv"], params["bv"]))
    s = jnp.einsum("bhqd,bhkd->bhqk", q, k) / math.sqrt(d_k)
    p = jax.nn.softmax(s, axis=-1)
    x = jnp.einsum("bhqk,bhkd->bhqd", p, v)
    x = x.transpose(0, 2, 1, 3).reshape(B, S, D)
    return lin(x, params["wo"], params["bo"])


# ---------------------------------- main --------------------------------------

def init_params(key, d_model):
    # deterministic init mimicking nn.Linear default: U(-1/sqrt(fan_in), +)
    bound = 1.0 / math.sqrt(d_model)
    ks = jax.random.split(key, 8)
    u = lambda k, shp: jax.random.uniform(k, shp, jnp.float32, -bound, bound)
    return {
        "wq": u(ks[0], (d_model, d_model)), "bq": u(ks[1], (d_model,)),
        "wk": u(ks[2], (d_model, d_model)), "bk": u(ks[3], (d_model,)),
        "wv": u(ks[4], (d_model, d_model)), "bv": u(ks[5], (d_model,)),
        "wo": u(ks[6], (d_model, d_model)), "bo": u(ks[7], (d_model,)),
    }


if __name__ == "__main__":
    # Small but TPU-tile-friendly shapes: B=2, S=128, d_model=128, h=4 (d_k=32).
    B, S, d_model, h = 2, 128, 128, 4

    root = jax.random.PRNGKey(0)
    kp, kx, kq, kk, kv = jax.random.split(root, 5)
    params = init_params(kp, d_model)

    TOL = dict(atol=2e-2, rtol=2e-2)   # bf16 MXU inputs, f32 accumulation

    # (1) BERT-style self-attention (query is key is value): fused QKV path.
    x = jax.random.normal(kx, (B, S, d_model), jnp.float32)
    out_self = jax.block_until_ready(multi_headed_attention(params, x, x, x, h))
    ref_self = reference(params, x, x, x, h)
    assert out_self.shape == (B, S, d_model)
    assert jnp.allclose(out_self, ref_self, **TOL), "self-attn mismatch vs reference"

    # (2) Distinct q/k/v inputs: separate tiled-linear projection path.
    query = jax.random.normal(kq, (B, S, d_model), jnp.float32)
    key_in = jax.random.normal(kk, (B, S, d_model), jnp.float32)
    value = jax.random.normal(kv, (B, S, d_model), jnp.float32)
    out = jax.block_until_ready(
        multi_headed_attention(params, query, key_in, value, h))
    ref = reference(params, query, key_in, value, h)
    assert jnp.allclose(out, ref, **TOL), "cross-attn mismatch vs reference"

    print("KERNEL_OK")
</pallas_src>

<mosaic_0001>
module attributes {stable_mosaic.version = 11 : i64} {
  func.func @_qkv_proj_kernel(%arg0: i32, %arg1: i32, %arg2: memref<128x128xf32, #tpu.memory_space<vmem>>, %arg3: memref<128x128xf32, #tpu.memory_space<vmem>>, %arg4: memref<128x128xf32, #tpu.memory_space<vmem>>, %arg5: memref<128x128xf32, #tpu.memory_space<vmem>>, %arg6: memref<3x128xf32, #tpu.memory_space<vmem>>, %arg7: memref<128x128xf32, #tpu.memory_space<vmem>>, %arg8: memref<128x128xf32, #tpu.memory_space<vmem>>, %arg9: memref<128x128xf32, #tpu.memory_space<vmem>>, %arg10: memref<128x128xf32, #tpu.memory_space<vmem>>, %arg11: memref<128x128xf32, #tpu.memory_space<vmem>>, %arg12: memref<128x128xf32, #tpu.memory_space<vmem>>) attributes {dimension_semantics = [#tpu.dimension_semantics<parallel>, #tpu.dimension_semantics<arbitrary>], iteration_bounds = array<i64: 2, 1>, scalar_prefetch = 0 : i64, scratch_operands = 3 : i64, tpu.core_type = #tpu.core_type<tc>, window_params = [{transform_indices = @transform_0, window_bounds = array<i64: 128, 128>}, {transform_indices = @transform_1, window_bounds = array<i64: 128, 128>}, {transform_indices = @transform_2, window_bounds = array<i64: 128, 128>}, {transform_indices = @transform_3, window_bounds = array<i64: 128, 128>}, {pipeline_mode = #tpu.pipeline_mode<synchronous>, transform_indices = @transform_4, window_bounds = array<i64: 3, 128>}, {transform_indices = @transform_5, window_bounds = array<i64: 128, 128>}, {transform_indices = @transform_6, window_bounds = array<i64: 128, 128>}, {transform_indices = @transform_7, window_bounds = array<i64: 128, 128>}]} {
    %c0_i32 = arith.constant 0 : i32
    %0 = arith.cmpi eq, %arg1, %c0_i32 : i32
    %1 = arith.extui %0 : i1 to i32
    %c0_i32_0 = arith.constant 0 : i32
    %2 = arith.cmpi ne, %1, %c0_i32_0 : i32
    scf.if %2 {
      %cst_24 = arith.constant 0.000000e+00 : f32
      %26 = vector.broadcast %cst_24 : f32 to vector<128x128xf32>
      %c0_25 = arith.constant 0 : index
      %c0_26 = arith.constant 0 : index
      %27 = vector.load %arg10[%c0_25, %c0_26] : memref<128x128xf32, #tpu.memory_space<vmem>>, vector<128x128xf32>
      tpu.vector_store %arg10[%c0_25, %c0_26], %26 {strides = array<i32>} : memref<128x128xf32, #tpu.memory_space<vmem>>, vector<128x128xf32>,
      %cst_27 = arith.constant 0.000000e+00 : f32
      %28 = vector.broadcast %cst_27 : f32 to vector<128x128xf32>
      %c0_28 = arith.constant 0 : index
      %c0_29 = arith.constant 0 : index
      %29 = vector.load %arg11[%c0_28, %c0_29] : memref<128x128xf32, #tpu.memory_space<vmem>>, vector<128x128xf32>
      tpu.vector_store %arg11[%c0_28, %c0_29], %28 {strides = array<i32>} : memref<128x128xf32, #tpu.memory_space<vmem>>, vector<128x128xf32>,
      %cst_30 = arith.constant 0.000000e+00 : f32
      %30 = vector.broadcast %cst_30 : f32 to vector<128x128xf32>
      %c0_31 = arith.constant 0 : index
      %c0_32 = arith.constant 0 : index
      %31 = vector.load %arg12[%c0_31, %c0_32] : memref<128x128xf32, #tpu.memory_space<vmem>>, vector<128x128xf32>
      tpu.vector_store %arg12[%c0_31, %c0_32], %30 {strides = array<i32>} : memref<128x128xf32, #tpu.memory_space<vmem>>, vector<128x128xf32>,
    } else {
    }
    %c0 = arith.constant 0 : index
    %c0_1 = arith.constant 0 : index
    %3 = vector.load %arg2[%c0, %c0_1] : memref<128x128xf32, #tpu.memory_space<vmem>>, vector<128x128xf32>
    %4 = arith.truncf %3 : vector<128x128xf32> to vector<128x128xbf16>
    %c0_2 = arith.constant 0 : index
    %c0_3 = arith.constant 0 : index
    %5 = vector.load %arg10[%c0_2, %c0_3] : memref<128x128xf32, #tpu.memory_space<vmem>>, vector<128x128xf32>
    %c0_4 = arith.constant 0 : index
    %c0_5 = arith.constant 0 : index
    %6 = vector.load %arg3[%c0_4, %c0_5] : memref<128x128xf32, #tpu.memory_space<vmem>>, vector<128x128xf32>
    %7 = arith.truncf %6 : vector<128x128xf32> to vector<128x128xbf16>
    %cst = arith.constant dense<0.000000e+00> : vector<128x128xf32>
    %8 = tpu.matmul %4, %7, %cst {dimension_numbers = #tpu.dot_dimension_numbers<[1], [0], [0], [1], [0, 0, 1, 1], [], []>} : vector<128x128xbf16>, vector<128x128xbf16>, vector<128x128xf32> -> vector<128x128xf32>
    %9 = arith.addf %5, %8 : vector<128x128xf32>
    %c0_6 = arith.constant 0 : index
    %c0_7 = arith.constant 0 : index
    %10 = vector.load %arg10[%c0_6, %c0_7] : memref<128x128xf32, #tpu.memory_space<vmem>>, vector<128x128xf32>
    tpu.vector_store %arg10[%c0_6, %c0_7], %9 {strides = array<i32>} : memref<128x128xf32, #tpu.memory_space<vmem>>, vector<128x128xf32>,
    %c0_8 = arith.constant 0 : index
    %c0_9 = arith.constant 0 : index
    %11 = vector.load %arg11[%c0_8, %c0_9] : memref<128x128xf32, #tpu.memory_space<vmem>>, vector<128x128xf32>
    %c0_10 = arith.constant 0 : index
    %c0_11 = arith.constant 0 : index
    %12 = vector.load %arg4[%c0_10, %c0_11] : memref<128x128xf32, #tpu.memory_space<vmem>>, vector<128x128xf32>
    %13 = arith.truncf %12 : vector<128x128xf32> to vector<128x128xbf16>
    %cst_12 = arith.constant dense<0.000000e+00> : vector<128x128xf32>
    %14 = tpu.matmul %4, %13, %cst_12 {dimension_numbers = #tpu.dot_dimension_numbers<[1], [0], [0], [1], [0, 0, 1, 1], [], []>} : vector<128x128xbf16>, vector<128x128xbf16>, vector<128x128xf32> -> vector<128x128xf32>
    %15 = arith.addf %11, %14 : vector<128x128xf32>
    %c0_13 = arith.constant 0 : index
    %c0_14 = arith.constant 0 : index
    %16 = vector.load %arg11[%c0_13, %c0_14] : memref<128x128xf32, #tpu.memory_space<vmem>>, vector<128x128xf32>
    tpu.vector_store %arg11[%c0_13, %c0_14], %15 {strides = array<i32>} : memref<128x128xf32, #tpu.memory_space<vmem>>, vector<128x128xf32>,
    %c0_15 = arith.constant 0 : index
    %c0_16 = arith.constant 0 : index
    %17 = vector.load %arg12[%c0_15, %c0_16] : memref<128x128xf32, #tpu.memory_space<vmem>>, vector<128x128xf32>
    %c0_17 = arith.constant 0 : index
    %c0_18 = arith.constant 0 : index
    %18 = vector.load %arg5[%c0_17, %c0_18] : memref<128x128xf32, #tpu.memory_space<vmem>>, vector<128x128xf32>
    %19 = arith.truncf %18 : vector<128x128xf32> to vector<128x128xbf16>
    %cst_19 = arith.constant dense<0.000000e+00> : vector<128x128xf32>
    %20 = tpu.matmul %4, %19, %cst_19 {dimension_numbers = #tpu.dot_dimension_numbers<[1], [0], [0], [1], [0, 0, 1, 1], [], []>} : vector<128x128xbf16>, vector<128x128xbf16>, vector<128x128xf32> -> vector<128x128xf32>
    %21 = arith.addf %17, %20 : vector<128x128xf32>
    %c0_20 = arith.constant 0 : index
    %c0_21 = arith.constant 0 : index
    %22 = vector.load %arg12[%c0_20, %c0_21] : memref<128x128xf32, #tpu.memory_space<vmem>>, vector<128x128xf32>
    tpu.vector_store %arg12[%c0_20, %c0_21], %21 {strides = array<i32>} : memref<128x128xf32, #tpu.memory_space<vmem>>, vector<128x128xf32>,
    %c0_i32_22 = arith.constant 0 : i32
    %23 = arith.cmpi eq, %arg1, %c0_i32_22 : i32
    %24 = arith.extui %23 : i1 to i32
    %c0_i32_23 = arith.constant 0 : i32
    %25 = arith.cmpi ne, %24, %c0_i32_23 : i32
    scf.if %25 {
      %c0_24 = arith.constant 0 : index
      %c0_25 = arith.constant 0 : index
      %26 = vector.load %arg10[%c0_24, %c0_25] : memref<128x128xf32, #tpu.memory_space<vmem>>, vector<128x128xf32>
      %c0_26 = arith.constant 0 : index
      %c0_27 = arith.constant 0 : index
      %27 = vector.load %arg6[%c0_26, %c0_27] : memref<3x128xf32, #tpu.memory_space<vmem>>, vector<1x128xf32>
      %28 = vector.broadcast %27 : vector<1x128xf32> to vector<128x128xf32>
      %29 = arith.addf %26, %28 : vector<128x128xf32>
      %c0_28 = arith.constant 0 : index
      %c0_29 = arith.constant 0 : index
      %30 = vector.load %arg7[%c0_28, %c0_29] : memref<128x128xf32, #tpu.memory_space<vmem>>, vector<128x128xf32>
      tpu.vector_store %arg7[%c0_28, %c0_29], %29 {strides = array<i32>} : memref<128x128xf32, #tpu.memory_space<vmem>>, vector<128x128xf32>,
      %c0_30 = arith.constant 0 : index
      %c0_31 = arith.constant 0 : index
      %31 = vector.load %arg11[%c0_30, %c0_31] : memref<128x128xf32, #tpu.memory_space<vmem>>, vector<128x128xf32>
      %c1 = arith.constant 1 : index
      %c0_32 = arith.constant 0 : index
      %32 = vector.load %arg6[%c1, %c0_32] : memref<3x128xf32, #tpu.memory_space<vmem>>, vector<1x128xf32>
      %33 = vector.broadcast %32 : vector<1x128xf32> to vector<128x128xf32>
      %34 = arith.addf %31, %33 : vector<128x128xf32>
      %c0_33 = arith.constant 0 : index
      %c0_34 = arith.constant 0 : index
      %35 = vector.load %arg8[%c0_33, %c0_34] : memref<128x128xf32, #tpu.memory_space<vmem>>, vector<128x128xf32>
      tpu.vector_store %arg8[%c0_33, %c0_34], %34 {strides = array<i32>} : memref<128x128xf32, #tpu.memory_space<vmem>>, vector<128x128xf32>,
      %c0_35 = arith.constant 0 : index
      %c0_36 = arith.constant 0 : index
      %36 = vector.load %arg12[%c0_35, %c0_36] : memref<128x128xf32, #tpu.memory_space<vmem>>, vector<128x128xf32>
      %c2 = arith.constant 2 : index
      %c0_37 = arith.constant 0 : index
      %37 = vector.load %arg6[%c2, %c0_37] : memref<3x128xf32, #tpu.memory_space<vmem>>, vector<1x128xf32>
      %38 = vector.broadcast %37 : vector<1x128xf32> to vector<128x128xf32>
      %39 = arith.addf %36, %38 : vector<128x128xf32>
      %c0_38 = arith.constant 0 : index
      %c0_39 = arith.constant 0 : index
      %40 = vector.load %arg9[%c0_38, %c0_39] : memref<128x128xf32, #tpu.memory_space<vmem>>, vector<128x128xf32>
      tpu.vector_store %arg9[%c0_38, %c0_39], %39 {strides = array<i32>} : memref<128x128xf32, #tpu.memory_space<vmem>>, vector<128x128xf32>,
    } else {
    }
    return
  }
  func.func @transform_0(%arg0: i32, %arg1: i32) -> (i32, i32) {
    %c0_i32 = arith.constant 0 : i32
    return %arg0, %arg1 : i32, i32
  }
  func.func @transform_1(%arg0: i32, %arg1: i32) -> (i32, i32) {
    %c0_i32 = arith.constant 0 : i32
    %c0_i32_0 = arith.constant 0 : i32
    return %arg1, %c0_i32 : i32, i32
  }
  func.func @transform_2(%arg0: i32, %arg1: i32) -> (i32, i32) {
    %c0_i32 = arith.constant 0 : i32
    %c0_i32_0 = arith.constant 0 : i32
    return %arg1, %c0_i32 : i32, i32
  }
  func.func @transform_3(%arg0: i32, %arg1: i32) -> (i32, i32) {
    %c0_i32 = arith.constant 0 : i32
    %c0_i32_0 = arith.constant 0 : i32
    return %arg1, %c0_i32 : i32, i32
  }
  func.func @transform_4(%arg0: i32, %arg1: i32) -> (i32, i32) {
    %c0_i32 = arith.constant 0 : i32
    %c0_i32_0 = arith.constant 0 : i32
    %c0_i32_1 = arith.constant 0 : i32
    return %c0_i32, %c0_i32_0 : i32, i32
  }
  func.func @transform_5(%arg0: i32, %arg1: i32) -> (i32, i32) {
    %c0_i32 = arith.constant 0 : i32
    %c0_i32_0 = arith.constant 0 : i32
    return %arg0, %c0_i32 : i32, i32
  }
  func.func @transform_6(%arg0: i32, %arg1: i32) -> (i32, i32) {
    %c0_i32 = arith.constant 0 : i32
    %c0_i32_0 = arith.constant 0 : i32
    return %arg0, %c0_i32 : i32, i32
  }
  func.func @transform_7(%arg0: i32, %arg1: i32) -> (i32, i32) {
    %c0_i32 = arith.constant 0 : i32
    %c0_i32_0 = arith.constant 0 : i32
    return %arg0, %c0_i32 : i32, i32
  }
}

</mosaic_0001>

<llo_original>
// kernel: tpu_custom_call.1
$region0: #{tpu_custom_call.1}
  #allocation0 [shape = 'u32[]', space=smem, size = 0x4, offset = 0x4, fixed_abs, tag = 'smem constant byte address 0x4 - core index']
  #allocation1 [shape = 'u32[72,128]{1,0:T(1,128)}', space=vmem, size = 0x9000, scoped, tag = 'internal scratch']
  #allocation2 [shape = 'f32[128,128]{1,0:T(8,128)}', space=vmem, size = 0x10000, scoped, tag = 'scratch operand']
  #allocation3 [shape = 'f32[128,128]{1,0:T(8,128)}', space=vmem, size = 0x10000, scoped, tag = 'scratch operand']
  #allocation4 [shape = 'f32[128,128]{1,0:T(8,128)}', space=vmem, size = 0x10000, scoped, tag = 'scratch operand']
  %s0 = inlined_call_operand.hbm [shape: f32[256,128], index: 0, kind: input, shape index: {}]
  %s1 = inlined_call_operand.hbm [shape: f32[128,128], index: 1, kind: input, shape index: {}]
  %s2 = inlined_call_operand.hbm [shape: f32[128,128], index: 2, kind: input, shape index: {}]
  %s3 = inlined_call_operand.hbm [shape: f32[128,128], index: 3, kind: input, shape index: {}]
  %s4 = inlined_call_operand.hbm [shape: f32[3,128], index: 4, kind: input, shape index: {}]
  %s5 = inlined_call_operand.hbm [shape: f32[256,128], index: 5, kind: output, shape index: {0}]
  %s6 = inlined_call_operand.hbm [shape: f32[256,128], index: 6, kind: output, shape index: {1}]
  %s7 = inlined_call_operand.hbm [shape: f32[256,128], index: 7, kind: output, shape index: {2}]
  %8 = xla_tuple %s5, %s6, %s7
  %s9 = sld [smem:[#allocation0]]
  $region97: #{tpu_custom_call.1} parent=0
    _
  %s11 = ssub.s32 1, %s9
  %s12 = scalar_select 0, %s11, %s9
  $region1: #{tpu_custom_call.1} parent=0
    #allocation5 [shape = 'u8[131072]{0}', space=vmem, size = 0x20000, scoped, tag = 'input window, operand 0']
    #allocation6 [shape = 's32[2]{0}', space=sflag, size = 0x8, scoped, tag = 'scoped memory for tpu_custom_call.1']
    #allocation7 [shape = 's32[2]{0}', space=sflag, size = 0x8, scoped, tag = 'scoped memory for tpu_custom_call.1']
    #allocation8 [shape = 'u8[65536]{0}', space=vmem, size = 0x10000, scoped, tag = 'input window, operand 1, single buffered']
    #allocation9 [shape = 's32[1]{0}', space=sflag, size = 0x4, scoped, tag = 'scoped memory for tpu_custom_call.1']
    #allocation10 [shape = 'u8[65536]{0}', space=vmem, size = 0x10000, scoped, tag = 'input window, operand 2, single buffered']
    #allocation11 [shape = 'u8[65536]{0}', space=vmem, size = 0x10000, scoped, tag = 'input window, operand 3, single buffered']
    #allocation12 [shape = 's32[1]{0}', space=sflag, size = 0x4, scoped, tag = 'scoped memory for tpu_custom_call.1']
    #allocation13 [shape = 'u8[2048]{0}', space=vmem, size = 0x800, scoped, tag = 'input window, operand 4, single buffered']
    #allocation14 [shape = 'u8[131072]{0}', space=vmem, size = 0x20000, scoped, tag = 'output window, operand 0']
    #allocation15 [shape = 'u8[131072]{0}', space=vmem, size = 0x20000, scoped, tag = 'output window, operand 1']
    #allocation16 [shape = 's32[2]{0}', space=sflag, size = 0x8, scoped, tag = 'scoped memory for tpu_custom_call.1']
    #allocation17 [shape = 'u8[131072]{0}', space=vmem, size = 0x20000, scoped, tag = 'output window, operand 2']
    %13 = vsyncpa [#allocation6], 0
    %s14 = scalar_lea.sflag [#allocation6], 1
    %15 = vsyncpa %s14, 0
    %16 = vsyncpa [#allocation9], 0
    %17 = vsyncpa [#allocation12], 0
    %18 = vsyncpa [#allocation7], 0
    %s19 = scalar_lea.sflag [#allocation7], 1
    %20 = vsyncpa %s19, 0
    %21 = vsyncpa [#allocation16], 0
    %s22 = scalar_lea.sflag [#allocation16], 1
    %23 = vsyncpa %s22, 0
    loop: start=0, step=1, limit=4
    $region2: #{tpu_custom_call.1} parent=1 // loop_pre_header
      _
    $region3: #{tpu_custom_call.1} parent=1 // loop_header
      %s25 = sphi 0, %s29
      %p26 = scmp.ge.s32.totalorder %s25, 4
      %s32 = sphi 0, %s44
      %s33 = sphi 0, %s40
      %s34 = sphi 0, %s32
      %s35 = sphi 0, %s33
      %s36 = sphi 0, %s34
      %s37 = sphi 0, %s35
      %s49 = sphi 0, %s51
      %s52 = sphi 0, %s49
      %s53 = sphi 0, %s52
      %s69 = sphi 0, %s53
      %s75 = sphi 0, %s77
      %s78 = sphi 0, %s75
      %s79 = sphi 0, %s78
      %s95 = sphi 0, %s79
      %s101 = sphi 0, %s103
      %s104 = sphi 0, %s101
      %s105 = sphi 0, %s104
      %s121 = sphi 0, %s105
      %s127 = sphi 0, %s129
      %s130 = sphi 0, %s127
      %s131 = sphi 0, %s130
      %s147 = sphi 0, %s131
      %s151 = sphi 0, %s151
      %s153 = sphi 0, %s151
      %s154 = sphi 0, %s153
      %s168 = sphi 0, %s154
      %s174 = sphi 0, %s176
      %s177 = sphi 0, %s174
      %s178 = sphi 0, %s177
      %s194 = sphi 0, %s178
      %s200 = sphi 0, %s202
      %s203 = sphi 0, %s200
      %s204 = sphi 0, %s203
      %s220 = sphi 0, %s204
      %s226 = sphi 0, %s228
      %s229 = sphi 0, %s226
      %s230 = sphi 0, %s229
      %s246 = sphi 0, %s230
    $region4: #{tpu_custom_call.1} parent=1 // loop_header_branch
      %28 = sbr.rel (%p26) target = $region8
    $region5: #{tpu_custom_call.1} parent=1 // loop_body
      %s30 = ssub.s32 %s25, 1
      %s31 = ssub.s32 %s25, 2
      %s38 = sadd.s32 1, %s33
      %p39 = scmp.ge.s32.totalorder %s38, 1
      %s40 = scalar_select %p39, 0, %s38
      %s41 = sadd.s32 1, %s32
      %s42 = scalar_select %p39, %s41, %s32
      %p43 = scmp.ge.s32.totalorder %s42, 2
      %s44 = scalar_select %p43, 0, %s42
      %s45 = ssub.s32 %s32, %s44
      %s46 = ssub.s32 %s33, %s40
      %s47 = sor.u32 %s45, %s46
      %p48 = scmp.eq.s32.totalorder %s47, 0
      %s50 = sadd.s32 %s49, 1
      %s51 = scalar_select %p48, %s49, %s50
      %p54 = pneg %p48
      %p55 = scmp.eq.s32.totalorder %s25, 1
      %p56 = por %p54, %p55
      %p57 = scmp.ne.s32.totalorder %s49, %s52
      %p58 = scmp.eq.s32.totalorder %s25, 0
      %p59 = por %p57, %p58
      %p60 = scmp.ne.s32.totalorder %s49, %s52
      %p61 = scmp.eq.s32.totalorder %s30, 1
      %p62 = por %p60, %p61
      %p63 = scmp.ne.s32.totalorder %s52, %s53
      %p64 = scmp.eq.s32.totalorder %s30, 0
      %p65 = por %p63, %p64
      %p66 = scmp.ne.s32.totalorder %s52, %s53
      %p67 = scmp.eq.s32.totalorder %s31, 1
      %p68 = por %p66, %p67
      %p70 = scmp.ne.s32.totalorder %s53, %s69
      %p71 = scmp.eq.s32.totalorder %s31, 0
      %p72 = por %p70, %p71
      %s73 = ssub.s32 %s33, %s40
      %p74 = scmp.eq.s32.totalorder %s73, 0
      %s76 = sadd.s32 %s75, 1
      %s77 = scalar_select %p74, %s75, %s76
      %p80 = pneg %p74
      %p81 = scmp.eq.s32.totalorder %s25, 1
      %p82 = por %p80, %p81
      %p83 = scmp.ne.s32.totalorder %s75, %s78
      %p84 = scmp.eq.s32.totalorder %s25, 0
      %p85 = por %p83, %p84
      %p86 = scmp.ne.s32.totalorder %s75, %s78
      %p87 = scmp.eq.s32.totalorder %s30, 1
      %p88 = por %p86, %p87
      %p89 = scmp.ne.s32.totalorder %s78, %s79
      %p90 = scmp.eq.s32.totalorder %s30, 0
      %p91 = por %p89, %p90
      %p92 = scmp.ne.s32.totalorder %s78, %s79
      %p93 = scmp.eq.s32.totalorder %s31, 1
      %p94 = por %p92, %p93
      %p96 = scmp.ne.s32.totalorder %s79, %s95
      %p97 = scmp.eq.s32.totalorder %s31, 0
      %p98 = por %p96, %p97
      %s99 = ssub.s32 %s33, %s40
      %p100 = scmp.eq.s32.totalorder %s99, 0
      %s102 = sadd.s32 %s101, 1
      %s103 = scalar_select %p100, %s101, %s102
      %p106 = pneg %p100
      %p107 = scmp.eq.s32.totalorder %s25, 1
      %p108 = por %p106, %p107
      %p109 = scmp.ne.s32.totalorder %s101, %s104
      %p110 = scmp.eq.s32.totalorder %s25, 0
      %p111 = por %p109, %p110
      %p112 = scmp.ne.s32.totalorder %s101, %s104
      %p113 = scmp.eq.s32.totalorder %s30, 1
      %p114 = por %p112, %p113
      %p115 = scmp.ne.s32.totalorder %s104, %s105
      %p116 = scmp.eq.s32.totalorder %s30, 0
      %p117 = por %p115, %p116
      %p118 = scmp.ne.s32.totalorder %s104, %s105
      %p119 = scmp.eq.s32.totalorder %s31, 1
      %p120 = por %p118, %p119
      %p122 = scmp.ne.s32.totalorder %s105, %s121
      %p123 = scmp.eq.s32.totalorder %s31, 0
      %p124 = por %p122, %p123
      %s125 = ssub.s32 %s33, %s40
      %p126 = scmp.eq.s32.totalorder %s125, 0
      %s128 = sadd.s32 %s127, 1
      %s129 = scalar_select %p126, %s127, %s128
      %p132 = pneg %p126
      %p133 = scmp.eq.s32.totalorder %s25, 1
      %p134 = por %p132, %p133
      %p135 = scmp.ne.s32.totalorder %s127, %s130
      %p136 = scmp.eq.s32.totalorder %s25, 0
      %p137 = por %p135, %p136
      %p138 = scmp.ne.s32.totalorder %s127, %s130
      %p139 = scmp.eq.s32.totalorder %s30, 1
      %p140 = por %p138, %p139
      %p141 = scmp.ne.s32.totalorder %s130, %s131
      %p142 = scmp.eq.s32.totalorder %s30, 0
      %p143 = por %p141, %p142
      %p144 = scmp.ne.s32.totalorder %s130, %s131
      %p145 = scmp.eq.s32.totalorder %s31, 1
      %p146 = por %p144, %p145
      %p148 = scmp.ne.s32.totalorder %s131, %s147
      %p149 = scmp.eq.s32.totalorder %s31, 0
      %p150 = por %p148, %p149
      %s152 = sadd.s32 %s151, 1
      %p155 = scmp.eq.s32.totalorder %s25, 1
      %p156 = scmp.ne.s32.totalorder %s151, %s153
      %p157 = scmp.eq.s32.totalorder %s25, 0
      %p158 = por %p156, %p157
      %p159 = scmp.ne.s32.totalorder %s151, %s153
      %p160 = scmp.eq.s32.totalorder %s30, 1
      %p161 = por %p159, %p160
      %p162 = scmp.ne.s32.totalorder %s153, %s154
      %p163 = scmp.eq.s32.totalorder %s30, 0
      %p164 = por %p162, %p163
      %p165 = scmp.ne.s32.totalorder %s153, %s154
      %p166 = scmp.eq.s32.totalorder %s31, 1
      %p167 = por %p165, %p166
      %p169 = scmp.ne.s32.totalorder %s154, %s168
      %p170 = scmp.eq.s32.totalorder %s31, 0
      %p171 = por %p169, %p170
      %s172 = ssub.s32 %s32, %s44
      %p173 = scmp.eq.s32.totalorder %s172, 0
      %s175 = sadd.s32 %s174, 1
      %s176 = scalar_select %p173, %s174, %s175
      %p179 = pneg %p173
      %p180 = scmp.eq.s32.totalorder %s25, 1
      %p181 = por %p179, %p180
      %p182 = scmp.ne.s32.totalorder %s174, %s177
      %p183 = scmp.eq.s32.totalorder %s25, 0
      %p184 = por %p182, %p183
      %p185 = scmp.ne.s32.totalorder %s174, %s177
      %p186 = scmp.eq.s32.totalorder %s30, 1
      %p187 = por %p185, %p186
      %p188 = scmp.ne.s32.totalorder %s177, %s178
      %p189 = scmp.eq.s32.totalorder %s30, 0
      %p190 = por %p188, %p189
      %p191 = scmp.ne.s32.totalorder %s177, %s178
      %p192 = scmp.eq.s32.totalorder %s31, 1
      %p193 = por %p191, %p192
      %p195 = scmp.ne.s32.totalorder %s178, %s194
      %p196 = scmp.eq.s32.totalorder %s31, 0
      %p197 = por %p195, %p196
      %s198 = ssub.s32 %s32, %s44
      %p199 = scmp.eq.s32.totalorder %s198, 0
      %s201 = sadd.s32 %s200, 1
      %s202 = scalar_select %p199, %s200, %s201
      %p205 = pneg %p199
      %p206 = scmp.eq.s32.totalorder %s25, 1
      %p207 = por %p205, %p206
      %p208 = scmp.ne.s32.totalorder %s200, %s203
      %p209 = scmp.eq.s32.totalorder %s25, 0
      %p210 = por %p208, %p209
      %p211 = scmp.ne.s32.totalorder %s200, %s203
      %p212 = scmp.eq.s32.totalorder %s30, 1
      %p213 = por %p211, %p212
      %p214 = scmp.ne.s32.totalorder %s203, %s204
      %p215 = scmp.eq.s32.totalorder %s30, 0
      %p216 = por %p214, %p215
      %p217 = scmp.ne.s32.totalorder %s203, %s204
      %p218 = scmp.eq.s32.totalorder %s31, 1
      %p219 = por %p217, %p218
      %p221 = scmp.ne.s32.totalorder %s204, %s220
      %p222 = scmp.eq.s32.totalorder %s31, 0
      %p223 = por %p221, %p222
      %s224 = ssub.s32 %s32, %s44
      %p225 = scmp.eq.s32.totalorder %s224, 0
      %s227 = sadd.s32 %s226, 1
      %s228 = scalar_select %p225, %s226, %s227
      %p231 = pneg %p225
      %p232 = scmp.eq.s32.totalorder %s25, 1
      %p233 = por %p231, %p232
      %p234 = scmp.ne.s32.totalorder %s226, %s229
      %p235 = scmp.eq.s32.totalorder %s25, 0
      %p236 = por %p234, %p235
      %p237 = scmp.ne.s32.totalorder %s226, %s229
      %p238 = scmp.eq.s32.totalorder %s30, 1
      %p239 = por %p237, %p238
      %p240 = scmp.ne.s32.totalorder %s229, %s230
      %p241 = scmp.eq.s32.totalorder %s30, 0
      %p242 = por %p240, %p241
      %p243 = scmp.ne.s32.totalorder %s229, %s230
      %p244 = scmp.eq.s32.totalorder %s31, 1
      %p245 = por %p243, %p244
      %p247 = scmp.ne.s32.totalorder %s230, %s246
      %p248 = scmp.eq.s32.totalorder %s31, 0
      %p249 = por %p247, %p248
      %p250 = scmp.le.s32.totalorder 1, %s25
      %p251 = scmp.lt.s32.totalorder %s25, 3
      %p252 = pnand %p250, %p251
      %p253 = pneg %p252
      // Predicated region
      $region9: #{tpu_custom_call.1} parent=5 // pred_check
        _
      $region10: #{tpu_custom_call.1} parent=5 // pred_check_branch
        %255 = sbr.rel (%p252) target = $region12
      $region11: #{tpu_custom_call.1} parent=5 // pred_region
        %s256 = ssub.s32 %s25, 1
        // Predicated region
        $region13: #{tpu_custom_call.1} parent=11 // pred_check
          %p257 = pneg %p91
        $region14: #{tpu_custom_call.1} parent=11 // pred_check_branch
          %259 = sbr.rel (%p257) target = $region16
        $region15: #{tpu_custom_call.1} parent=11 // pred_region
          %s260 = smul.u32 16, %s35
          %262 = vsyncadd [#allocation9], 0
          %s263 = smul.addr %s260, 8
          %s264 = scalar_lea.hbm %s1, %s263
          %s265 = sshll.u32 %s264, 4
          %s266 = int_to_ptr.hbm [resolvable:$true] %s265
          %s267 = sshll.u32 [#allocation8], 4
          %s268 = int_to_ptr.vmem [resolvable:$true] %s267
          %273 = dma.hbm_to_vmem [thread:$0]  %s266, 2048, %s268, [#allocation9], 128, 128, 8
        $region16: #{tpu_custom_call.1} parent=11 // pred_fallthru
          _
        // Predicated region
        $region17: #{tpu_custom_call.1} parent=11 // pred_check
          %p274 = pneg %p117
        $region18: #{tpu_custom_call.1} parent=11 // pred_check_branch
          %276 = sbr.rel (%p274) target = $region20
        $region19: #{tpu_custom_call.1} parent=11 // pred_region
          %s277 = smul.u32 16, %s35
          %279 = vsyncadd [#allocation9], 0
          %s280 = smul.addr %s277, 8
          %s281 = scalar_lea.hbm %s2, %s280
          %s282 = sshll.u32 %s281, 4
          %s283 = int_to_ptr.hbm [resolvable:$true] %s282
          %s284 = sshll.u32 [#allocation10], 4
          %s285 = int_to_ptr.vmem [resolvable:$true] %s284
          %290 = dma.hbm_to_vmem [thread:$0]  %s283, 2048, %s285, [#allocation9], 128, 128, 8
        $region20: #{tpu_custom_call.1} parent=11 // pred_fallthru
          _
        // Predicated region
        $region21: #{tpu_custom_call.1} parent=11 // pred_check
          %p291 = pneg %p143
        $region22: #{tpu_custom_call.1} parent=11 // pred_check_branch
          %293 = sbr.rel (%p291) target = $region24
        $region23: #{tpu_custom_call.1} parent=11 // pred_region
          %s294 = smul.u32 16, %s35
          %296 = vsyncadd [#allocation12], 0
          %s297 = smul.addr %s294, 8
          %s298 = scalar_lea.hbm %s3, %s297
          %s299 = sshll.u32 %s298, 4
          %s300 = int_to_ptr.hbm [resolvable:$true] %s299
          %s301 = sshll.u32 [#allocation11], 4
          %s302 = int_to_ptr.vmem [resolvable:$true] %s301
          %307 = dma.hbm_to_vmem [thread:$0]  %s300, 2048, %s302, [#allocation12], 128, 128, 8
        $region24: #{tpu_custom_call.1} parent=11 // pred_fallthru
          _
        // Predicated region
        $region25: #{tpu_custom_call.1} parent=11 // pred_check
          %p308 = pneg %p164
        $region26: #{tpu_custom_call.1} parent=11 // pred_check_branch
          %310 = sbr.rel (%p308) target = $region28
        $region27: #{tpu_custom_call.1} parent=11 // pred_region
          %312 = vsyncadd [#allocation12], 0
          %s314 = sshll.u32 %s4, 4
          %s315 = int_to_ptr.hbm [resolvable:$true] %s314
          %s316 = sshll.u32 [#allocation13], 4
          %s317 = int_to_ptr.vmem [resolvable:$true] %s316
          %319 = dma.hbm_to_vmem [thread:$0]  %s315, 64, %s317, [#allocation12]
        $region28: #{tpu_custom_call.1} parent=11 // pred_fallthru
          _
      $region12: #{tpu_custom_call.1} parent=5 // pred_fallthru
        _
      %p320 = scmp.lt.s32.totalorder %s25, 2
      // Predicated region
      $region29: #{tpu_custom_call.1} parent=5 // pred_check
        %p321 = pneg %p320
      $region30: #{tpu_custom_call.1} parent=5 // pred_check_branch
        %323 = sbr.rel (%p321) target = $region32
      $region31: #{tpu_custom_call.1} parent=5 // pred_region
        // Predicated region
        $region33: #{tpu_custom_call.1} parent=31 // pred_check
          %p324 = pneg %p59
        $region34: #{tpu_custom_call.1} parent=31 // pred_check_branch
          %326 = sbr.rel (%p324) target = $region36
        $region35: #{tpu_custom_call.1} parent=31 // pred_region
          %s327 = sand.u32 %s49, 1
          %s328 = scalar_lea.sflag [#allocation6], %s327
          %s329 = sand.u32 %s49, 1
          %s330 = smul.addr %s329, 128
          %s331 = scalar_lea.vmem [#allocation5], %s330
          %s332 = smul.u32 16, %s32
          %334 = vsyncadd %s328, 0
          %s335 = sadd.s32 %s33, %s332
          %s336 = smul.addr %s335, 8
          %s337 = scalar_lea.hbm %s0, %s336
          %s338 = sshll.u32 %s337, 4
          %s339 = int_to_ptr.hbm [resolvable:$true] %s338
          %s340 = sshll.u32 %s331, 4
          %s341 = int_to_ptr.vmem [resolvable:$true] %s340
          %346 = dma.hbm_to_vmem [thread:$0]  %s339, 2048, %s341, %s328, 128, 128, 8
        $region36: #{tpu_custom_call.1} parent=31 // pred_fallthru
          _
      $region32: #{tpu_custom_call.1} parent=5 // pred_fallthru
        _
      %p347 = scmp.le.s32.totalorder 1, %s25
      %p348 = scmp.lt.s32.totalorder %s25, 3
      %p349 = pnand %p347, %p348
      %p350 = pneg %p349
      // Predicated region
      $region37: #{tpu_custom_call.1} parent=5 // pred_check
        _
      $region38: #{tpu_custom_call.1} parent=5 // pred_check_branch
        %352 = sbr.rel (%p349) target = $region40
      $region39: #{tpu_custom_call.1} parent=5 // pred_region
        %s353 = ssub.s32 %s25, 1
        %s354 = sand.u32 %s52, 1
        %s355 = scalar_lea.sflag [#allocation6], %s354
        %s356 = sand.u32 %s52, 1
        %s357 = smul.addr %s356, 128
        %s358 = scalar_lea.vmem [#allocation5], %s357
        // Predicated region
        $region41: #{tpu_custom_call.1} parent=39 // pred_check
          %p359 = pneg %p65
        $region42: #{tpu_custom_call.1} parent=39 // pred_check_branch
          %361 = sbr.rel (%p359) target = $region44
        $region43: #{tpu_custom_call.1} parent=39 // pred_region
          %363 = dma.done %s355, 2048
        $region44: #{tpu_custom_call.1} parent=39 // pred_fallthru
          _
        // Predicated region
        $region45: #{tpu_custom_call.1} parent=39 // pred_check
          %p364 = pneg %p91
        $region46: #{tpu_custom_call.1} parent=39 // pred_check_branch
          %366 = sbr.rel (%p364) target = $region48
        $region47: #{tpu_custom_call.1} parent=39 // pred_region
          %368 = dma.done [#allocation9], 2048
        $region48: #{tpu_custom_call.1} parent=39 // pred_fallthru
          _
        // Predicated region
        $region49: #{tpu_custom_call.1} parent=39 // pred_check
          %p369 = pneg %p117
        $region50: #{tpu_custom_call.1} parent=39 // pred_check_branch
          %371 = sbr.rel (%p369) target = $region52
        $region51: #{tpu_custom_call.1} parent=39 // pred_region
          %373 = dma.done [#allocation9], 2048
        $region52: #{tpu_custom_call.1} parent=39 // pred_fallthru
          _
        // Predicated region
        $region53: #{tpu_custom_call.1} parent=39 // pred_check
          %p374 = pneg %p143
        $region54: #{tpu_custom_call.1} parent=39 // pred_check_branch
          %376 = sbr.rel (%p374) target = $region56
        $region55: #{tpu_custom_call.1} parent=39 // pred_region
          %378 = dma.done [#allocation12], 2048
        $region56: #{tpu_custom_call.1} parent=39 // pred_fallthru
          _
        // Predicated region
        $region57: #{tpu_custom_call.1} parent=39 // pred_check
          %p379 = pneg %p164
        $region58: #{tpu_custom_call.1} parent=39 // pred_check_branch
          %381 = sbr.rel (%p379) target = $region60
        $region59: #{tpu_custom_call.1} parent=39 // pred_region
          %383 = dma.done [#allocation12], 64
        $region60: #{tpu_custom_call.1} parent=39 // pred_fallthru
          _
        %s384 = sand.u32 %s52, 1
        %s385 = scalar_lea.sflag [#allocation6], %s384
        %s386 = sand.u32 %s52, 1
        %s387 = smul.addr %s386, 128
        %s388 = scalar_lea.vmem [#allocation5], %s387
        %p389 = pneg %p65
        %p390 = pneg %p62
        %p391 = pneg %p91
        %p392 = pneg %p88
        %p393 = pneg %p117
        %p394 = pneg %p114
        %p395 = pneg %p143
        %p396 = pneg %p140
        %p397 = pneg %p164
        %p398 = pneg %p161
        %p399 = pneg %p190
        %p400 = pneg %p187
        %s401 = sand.u32 %s177, 1
        %s402 = scalar_lea.sflag [#allocation7], %s401
        %s403 = sand.u32 %s177, 1
        %s404 = smul.addr %s403, 128
        %s405 = scalar_lea.vmem [#allocation14], %s404
        %p406 = pneg %p216
        %p407 = pneg %p213
        %s408 = sand.u32 %s30, 1
        %s409 = scalar_lea.sflag [#allocation16], %s408
        %s410 = sand.u32 %s203, 1
        %s411 = smul.addr %s410, 128
        %s412 = scalar_lea.vmem [#allocation15], %s411
        %p413 = pneg %p242
        %p414 = pneg %p239
        %s415 = sand.u32 %s30, 1
        %s416 = scalar_lea.sflag [#allocation16], %s415
        %s417 = sand.u32 %s229, 1
        %s418 = smul.addr %s417, 128
        %s419 = scalar_lea.vmem [#allocation17], %s418
        %s420 = smul.u32 16, %s34
        %s421 = smul.u32 16, %s35
        %s422 = smul.u32 16, %s35
        %s423 = smul.u32 16, %s35
        %s424 = smul.u32 16, %s34
        %s425 = smul.u32 16, %s34
        %s426 = smul.u32 16, %s34
        %p427 = scmp.eq.s32.totalorder %s35, 0
        // Predicated region
        $region61: #{tpu_custom_call.1} parent=39 // pred_check
          %p428 = pneg %p427
        $region62: #{tpu_custom_call.1} parent=39 // pred_check_branch
          %430 = sbr.rel (%p428) target = $region64
        $region63: #{tpu_custom_call.1} parent=39 // pred_region
          %431 = vst [vmem:[#allocation2] sm:$0xff] 0.0
          %432 = vst [vmem:[#allocation2 + $0x8] sm:$0xff] 0.0
          %433 = vst [vmem:[#allocation2 + $0x10] sm:$0xff] 0.0
          %434 = vst [vmem:[#allocation2 + $0x18] sm:$0xff] 0.0
          %435 = vst [vmem:[#allocation2 + $0x20] sm:$0xff] 0.0
          %436 = vst [vmem:[#allocation2 + $0x28] sm:$0xff] 0.0
          %437 = vst [vmem:[#allocation2 + $0x30] sm:$0xff] 0.0
          %438 = vst [vmem:[#allocation2 + $0x38] sm:$0xff] 0.0
          %439 = vst [vmem:[#allocation2 + $0x40] sm:$0xff] 0.0
          %440 = vst [vmem:[#allocation2 + $0x48] sm:$0xff] 0.0
          %441 = vst [vmem:[#allocation2 + $0x50] sm:$0xff] 0.0
          %442 = vst [vmem:[#allocation2 + $0x58] sm:$0xff] 0.0
          %443 = vst [vmem:[#allocation2 + $0x60] sm:$0xff] 0.0
          %444 = vst [vmem:[#allocation2 + $0x68] sm:$0xff] 0.0
          %445 = vst [vmem:[#allocation2 + $0x70] sm:$0xff] 0.0
          %446 = vst [vmem:[#allocation2 + $0x78] sm:$0xff] 0.0
          %447 = vst [vmem:[#allocation3] sm:$0xff] 0.0
          %448 = vst [vmem:[#allocation3 + $0x8] sm:$0xff] 0.0
          %449 = vst [vmem:[#allocation3 + $0x10] sm:$0xff] 0.0
          %450 = vst [vmem:[#allocation3 + $0x18] sm:$0xff] 0.0
          %451 = vst [vmem:[#allocation3 + $0x20] sm:$0xff] 0.0
          %452 = vst [vmem:[#allocation3 + $0x28] sm:$0xff] 0.0
          %453 = vst [vmem:[#allocation3 + $0x30] sm:$0xff] 0.0
          %454 = vst [vmem:[#allocation3 + $0x38] sm:$0xff] 0.0
          %455 = vst [vmem:[#allocation3 + $0x40] sm:$0xff] 0.0
          %456 = vst [vmem:[#allocation3 + $0x48] sm:$0xff] 0.0
          %457 = vst [vmem:[#allocation3 + $0x50] sm:$0xff] 0.0
          %458 = vst [vmem:[#allocation3 + $0x58] sm:$0xff] 0.0
          %459 = vst [vmem:[#allocation3 + $0x60] sm:$0xff] 0.0
          %460 = vst [vmem:[#allocation3 + $0x68] sm:$0xff] 0.0
          %461 = vst [vmem:[#allocation3 + $0x70] sm:$0xff] 0.0
          %462 = vst [vmem:[#allocation3 + $0x78] sm:$0xff] 0.0
          %463 = vst [vmem:[#allocation4] sm:$0xff] 0.0
          %464 = vst [vmem:[#allocation4 + $0x8] sm:$0xff] 0.0
          %465 = vst [vmem:[#allocation4 + $0x10] sm:$0xff] 0.0
          %466 = vst [vmem:[#allocation4 + $0x18] sm:$0xff] 0.0
          %467 = vst [vmem:[#allocation4 + $0x20] sm:$0xff] 0.0
          %468 = vst [vmem:[#allocation4 + $0x28] sm:$0xff] 0.0
          %469 = vst [vmem:[#allocation4 + $0x30] sm:$0xff] 0.0
          %470 = vst [vmem:[#allocation4 + $0x38] sm:$0xff] 0.0
          %471 = vst [vmem:[#allocation4 + $0x40] sm:$0xff] 0.0
          %472 = vst [vmem:[#allocation4 + $0x48] sm:$0xff] 0.0
          %473 = vst [vmem:[#allocation4 + $0x50] sm:$0xff] 0.0
          %474 = vst [vmem:[#allocation4 + $0x58] sm:$0xff] 0.0
          %475 = vst [vmem:[#allocation4 + $0x60] sm:$0xff] 0.0
          %476 = vst [vmem:[#allocation4 + $0x68] sm:$0xff] 0.0
          %477 = vst [vmem:[#allocation4 + $0x70] sm:$0xff] 0.0
          %478 = vst [vmem:[#allocation4 + $0x78] sm:$0xff] 0.0
        $region64: #{tpu_custom_call.1} parent=39 // pred_fallthru
          _
        %v479 = vld [vmem:[%s358] sm:$0xff]
        %v480 = vld [vmem:[%s358 + $0x8] sm:$0xff]
        %v481 = vld [vmem:[%s358 + $0x10] sm:$0xff]
        %v482 = vld [vmem:[%s358 + $0x18] sm:$0xff]
        %v483 = vld [vmem:[%s358 + $0x20] sm:$0xff]
        %v484 = vld [vmem:[%s358 + $0x28] sm:$0xff]
        %v485 = vld [vmem:[%s358 + $0x30] sm:$0xff]
        %v486 = vld [vmem:[%s358 + $0x38] sm:$0xff]
        %v487 = vld [vmem:[%s358 + $0x40] sm:$0xff]
        %v488 = vld [vmem:[%s358 + $0x48] sm:$0xff]
        %v489 = vld [vmem:[%s358 + $0x50] sm:$0xff]
        %v490 = vld [vmem:[%s358 + $0x58] sm:$0xff]
        %v491 = vld [vmem:[%s358 + $0x60] sm:$0xff]
        %v492 = vld [vmem:[%s358 + $0x68] sm:$0xff]
        %v493 = vld [vmem:[%s358 + $0x70] sm:$0xff]
        %v494 = vld [vmem:[%s358 + $0x78] sm:$0xff]
        %v495 = vpack.c.bf16 %v480, %v479
        %v496 = vpack.c.bf16 %v482, %v481
        %v497 = vpack.c.bf16 %v484, %v483
        %v498 = vpack.c.bf16 %v486, %v485
        %v499 = vpack.c.bf16 %v488, %v487
        %v500 = vpack.c.bf16 %v490, %v489
        %v501 = vpack.c.bf16 %v492, %v491
        %v502 = vpack.c.bf16 %v494, %v493
        %v503 = vld [vmem:[#allocation2] sm:$0xff]
        %v504 = vld [vmem:[#allocation2 + $0x8] sm:$0xff]
        %v505 = vld [vmem:[#allocation2 + $0x10] sm:$0xff]
        %v506 = vld [vmem:[#allocation2 + $0x18] sm:$0xff]
        %v507 = vld [vmem:[#allocation2 + $0x20] sm:$0xff]
        %v508 = vld [vmem:[#allocation2 + $0x28] sm:$0xff]
        %v509 = vld [vmem:[#allocation2 + $0x30] sm:$0xff]
        %v510 = vld [vmem:[#allocation2 + $0x38] sm:$0xff]
        %v511 = vld [vmem:[#allocation2 + $0x40] sm:$0xff]
        %v512 = vld [vmem:[#allocation2 + $0x48] sm:$0xff]
        %v513 = vld [vmem:[#allocation2 + $0x50] sm:$0xff]
        %v514 = vld [vmem:[#allocation2 + $0x58] sm:$0xff]
        %v515 = vld [vmem:[#allocation2 + $0x60] sm:$0xff]
        %v516 = vld [vmem:[#allocation2 + $0x68] sm:$0xff]
        %v517 = vld [vmem:[#allocation2 + $0x70] sm:$0xff]
        %v518 = vld [vmem:[#allocation2 + $0x78] sm:$0xff]
        %v519 = vld [vmem:[#allocation8] sm:$0xff]
        %v520 = vld [vmem:[#allocation8 + $0x8] sm:$0xff]
        %v521 = vld [vmem:[#allocation8 + $0x10] sm:$0xff]
        %v522 = vld [vmem:[#allocation8 + $0x18] sm:$0xff]
        %v523 = vld [vmem:[#allocation8 + $0x20] sm:$0xff]
        %v524 = vld [vmem:[#allocation8 + $0x28] sm:$0xff]
        %v525 = vld [vmem:[#allocation8 + $0x30] sm:$0xff]
        %v526 = vld [vmem:[#allocation8 + $0x38] sm:$0xff]
        %v527 = vld [vmem:[#allocation8 + $0x40] sm:$0xff]
        %v528 = vld [vmem:[#allocation8 + $0x48] sm:$0xff]
        %v529 = vld [vmem:[#allocation8 + $0x50] sm:$0xff]
        %v530 = vld [vmem:[#allocation8 + $0x58] sm:$0xff]
        %v531 = vld [vmem:[#allocation8 + $0x60] sm:$0xff]
        %v532 = vld [vmem:[#allocation8 + $0x68] sm:$0xff]
        %v533 = vld [vmem:[#allocation8 + $0x70] sm:$0xff]
        %v534 = vld [vmem:[#allocation8 + $0x78] sm:$0xff]
        %v535 = vpack.c.bf16 %v520, %v519
        %v536 = vpack.c.bf16 %v522, %v521
        %v537 = vpack.c.bf16 %v524, %v523
        %v538 = vpack.c.bf16 %v526, %v525
        %v539 = vpack.c.bf16 %v528, %v527
        %v540 = vpack.c.bf16 %v530, %v529
        %v541 = vpack.c.bf16 %v532, %v531
        %v542 = vpack.c.bf16 %v534, %v533
        %543 = vmatpush.bf16.msra.mxu0 %v542
        %544 = vmatpush.bf16.msra.mxu0 %v541
        %545 = vmatpush.bf16.msra.mxu0 %v540
        %546 = vmatpush.bf16.msra.mxu0 %v539
        %547 = vmatpush.bf16.msra.mxu0 %v538
        %548 = vmatpush.bf16.msra.mxu0 %v537
        %549 = vmatpush.bf16.msra.mxu0 %v536
        %550 = vmatpush.bf16.msra.mxu0 %v535
        %551 = vmatmul.bf16.gmra.mxu0 %v495
        %v552 = vpop.f32.mrf.mxu0
        %v553 = vadd.f32 0.0, %v552
        %v554 = vpop.f32.mrf.mxu0
        %v555 = vadd.f32 0.0, %v554
        %556 = vmatmul.bf16.gmra.mxu0 %v496
        %v557 = vpop.f32.mrf.mxu0
        %v558 = vadd.f32 0.0, %v557
        %v559 = vpop.f32.mrf.mxu0
        %v560 = vadd.f32 0.0, %v559
        %561 = vmatmul.bf16.gmra.mxu0 %v497
        %v562 = vpop.f32.mrf.mxu0
        %v563 = vadd.f32 0.0, %v562
        %v564 = vpop.f32.mrf.mxu0
        %v565 = vadd.f32 0.0, %v564
        %566 = vmatmul.bf16.gmra.mxu0 %v498
        %v567 = vpop.f32.mrf.mxu0
        %v568 = vadd.f32 0.0, %v567
        %v569 = vpop.f32.mrf.mxu0
        %v570 = vadd.f32 0.0, %v569
        %571 = vmatmul.bf16.gmra.mxu0 %v499
        %v572 = vpop.f32.mrf.mxu0
        %v573 = vadd.f32 0.0, %v572
        %v574 = vpop.f32.mrf.mxu0
        %v575 = vadd.f32 0.0, %v574
        %576 = vmatmul.bf16.gmra.mxu0 %v500
        %v577 = vpop.f32.mrf.mxu0
        %v578 = vadd.f32 0.0, %v577
        %v579 = vpop.f32.mrf.mxu0
        %v580 = vadd.f32 0.0, %v579
        %581 = vmatmul.bf16.gmra.mxu0 %v501
        %v582 = vpop.f32.mrf.mxu0
        %v583 = vadd.f32 0.0, %v582
        %v584 = vpop.f32.mrf.mxu0
        %v585 = vadd.f32 0.0, %v584
        %586 = vmatmul.bf16.gmra.mxu0 %v502
        %v587 = vpop.f32.mrf.mxu0
        %v588 = vadd.f32 0.0, %v587
        %v589 = vpop.f32.mrf.mxu0
        %v590 = vadd.f32 0.0, %v589
        %591 = vdwg.mxu0
        %v592 = vadd.f32 %v503, %v553
        %v593 = vadd.f32 %v504, %v555
        %v594 = vadd.f32 %v505, %v558
        %v595 = vadd.f32 %v506, %v560
        %v596 = vadd.f32 %v507, %v563
        %v597 = vadd.f32 %v508, %v565
        %v598 = vadd.f32 %v509, %v568
        %v599 = vadd.f32 %v510, %v570
        %v600 = vadd.f32 %v511, %v573
        %v601 = vadd.f32 %v512, %v575
        %v602 = vadd.f32 %v513, %v578
        %v603 = vadd.f32 %v514, %v580
        %v604 = vadd.f32 %v515, %v583
        %v605 = vadd.f32 %v516, %v585
        %v606 = vadd.f32 %v517, %v588
        %v607 = vadd.f32 %v518, %v590
        %608 = vst [vmem:[#allocation2] sm:$0xff] %v592
        %609 = vst [vmem:[#allocation2 + $0x8] sm:$0xff] %v593
        %610 = vst [vmem:[#allocation2 + $0x10] sm:$0xff] %v594
        %611 = vst [vmem:[#allocation2 + $0x18] sm:$0xff] %v595
        %612 = vst [vmem:[#allocation2 + $0x20] sm:$0xff] %v596
        %613 = vst [vmem:[#allocation2 + $0x28] sm:$0xff] %v597
        %614 = vst [vmem:[#allocation2 + $0x30] sm:$0xff] %v598
        %615 = vst [vmem:[#allocation2 + $0x38] sm:$0xff] %v599
        %616 = vst [vmem:[#allocation2 + $0x40] sm:$0xff] %v600
        %617 = vst [vmem:[#allocation2 + $0x48] sm:$0xff] %v601
        %618 = vst [vmem:[#allocation2 + $0x50] sm:$0xff] %v602
        %619 = vst [vmem:[#allocation2 + $0x58] sm:$0xff] %v603
        %620 = vst [vmem:[#allocation2 + $0x60] sm:$0xff] %v604
        %621 = vst [vmem:[#allocation2 + $0x68] sm:$0xff] %v605
        %622 = vst [vmem:[#allocation2 + $0x70] sm:$0xff] %v606
        %623 = vst [vmem:[#allocation2 + $0x78] sm:$0xff] %v607
        %v624 = vld [vmem:[#allocation3] sm:$0xff]
        %v625 = vld [vmem:[#allocation3 + $0x8] sm:$0xff]
        %v626 = vld [vmem:[#allocation3 + $0x10] sm:$0xff]
        %v627 = vld [vmem:[#allocation3 + $0x18] sm:$0xff]
        %v628 = vld [vmem:[#allocation3 + $0x20] sm:$0xff]
        %v629 = vld [vmem:[#allocation3 + $0x28] sm:$0xff]
        %v630 = vld [vmem:[#allocation3 + $0x30] sm:$0xff]
        %v631 = vld [vmem:[#allocation3 + $0x38] sm:$0xff]
        %v632 = vld [vmem:[#allocation3 + $0x40] sm:$0xff]
        %v633 = vld [vmem:[#allocation3 + $0x48] sm:$0xff]
        %v634 = vld [vmem:[#allocation3 + $0x50] sm:$0xff]
        %v635 = vld [vmem:[#allocation3 + $0x58] sm:$0xff]
        %v636 = vld [vmem:[#allocation3 + $0x60] sm:$0xff]
        %v637 = vld [vmem:[#allocation3 + $0x68] sm:$0xff]
        %v638 = vld [vmem:[#allocation3 + $0x70] sm:$0xff]
        %v639 = vld [vmem:[#allocation3 + $0x78] sm:$0xff]
        %v640 = vld [vmem:[#allocation10] sm:$0xff]
        %v641 = vld [vmem:[#allocation10 + $0x8] sm:$0xff]
        %v642 = vld [vmem:[#allocation10 + $0x10] sm:$0xff]
        %v643 = vld [vmem:[#allocation10 + $0x18] sm:$0xff]
        %v644 = vld [vmem:[#allocation10 + $0x20] sm:$0xff]
        %v645 = vld [vmem:[#allocation10 + $0x28] sm:$0xff]
        %v646 = vld [vmem:[#allocation10 + $0x30] sm:$0xff]
        %v647 = vld [vmem:[#allocation10 + $0x38] sm:$0xff]
        %v648 = vld [vmem:[#allocation10 + $0x40] sm:$0xff]
        %v649 = vld [vmem:[#allocation10 + $0x48] sm:$0xff]
        %v650 = vld [vmem:[#allocation10 + $0x50] sm:$0xff]
        %v651 = vld [vmem:[#allocation10 + $0x58] sm:$0xff]
        %v652 = vld [vmem:[#allocation10 + $0x60] sm:$0xff]
        %v653 = vld [vmem:[#allocation10 + $0x68] sm:$0xff]
        %v654 = vld [vmem:[#allocation10 + $0x70] sm:$0xff]
        %v655 = vld [vmem:[#allocation10 + $0x78] sm:$0xff]
        %v656 = vpack.c.bf16 %v641, %v640
        %v657 = vpack.c.bf16 %v643, %v642
        %v658 = vpack.c.bf16 %v645, %v644
        %v659 = vpack.c.bf16 %v647, %v646
        %v660 = vpack.c.bf16 %v649, %v648
        %v661 = vpack.c.bf16 %v651, %v650
        %v662 = vpack.c.bf16 %v653, %v652
        %v663 = vpack.c.bf16 %v655, %v654
        %664 = vmatpush.bf16.msra.mxu0 %v663
        %665 = vmatpush.bf16.msra.mxu0 %v662
        %666 = vmatpush.bf16.msra.mxu0 %v661
        %667 = vmatpush.bf16.msra.mxu0 %v660
        %668 = vmatpush.bf16.msra.mxu0 %v659
        %669 = vmatpush.bf16.msra.mxu0 %v658
        %670 = vmatpush.bf16.msra.mxu0 %v657
        %671 = vmatpush.bf16.msra.mxu0 %v656
        %672 = vmatmul.bf16.gmra.mxu0 %v495
        %v673 = vpop.f32.mrf.mxu0
        %v674 = vadd.f32 0.0, %v673
        %v675 = vpop.f32.mrf.mxu0
        %v676 = vadd.f32 0.0, %v675
        %677 = vmatmul.bf16.gmra.mxu0 %v496
        %v678 = vpop.f32.mrf.mxu0
        %v679 = vadd.f32 0.0, %v678
        %v680 = vpop.f32.mrf.mxu0
        %v681 = vadd.f32 0.0, %v680
        %682 = vmatmul.bf16.gmra.mxu0 %v497
        %v683 = vpop.f32.mrf.mxu0
        %v684 = vadd.f32 0.0, %v683
        %v685 = vpop.f32.mrf.mxu0
        %v686 = vadd.f32 0.0, %v685
        %687 = vmatmul.bf16.gmra.mxu0 %v498
        %v688 = vpop.f32.mrf.mxu0
        %v689 = vadd.f32 0.0, %v688
        %v690 = vpop.f32.mrf.mxu0
        %v691 = vadd.f32 0.0, %v690
        %692 = vmatmul.bf16.gmra.mxu0 %v499
        %v693 = vpop.f32.mrf.mxu0
        %v694 = vadd.f32 0.0, %v693
        %v695 = vpop.f32.mrf.mxu0
        %v696 = vadd.f32 0.0, %v695
        %697 = vmatmul.bf16.gmra.mxu0 %v500
        %v698 = vpop.f32.mrf.mxu0
        %v699 = vadd.f32 0.0, %v698
        %v700 = vpop.f32.mrf.mxu0
        %v701 = vadd.f32 0.0, %v700
        %702 = vmatmul.bf16.gmra.mxu0 %v501
        %v703 = vpop.f32.mrf.mxu0
        %v704 = vadd.f32 0.0, %v703
        %v705 = vpop.f32.mrf.mxu0
        %v706 = vadd.f32 0.0, %v705
        %707 = vmatmul.bf16.gmra.mxu0 %v502
        %v708 = vpop.f32.mrf.mxu0
        %v709 = vadd.f32 0.0, %v708
        %v710 = vpop.f32.mrf.mxu0
        %v711 = vadd.f32 0.0, %v710
        %712 = vdwg.mxu0
        %v713 = vadd.f32 %v624, %v674
        %v714 = vadd.f32 %v625, %v676
        %v715 = vadd.f32 %v626, %v679
        %v716 = vadd.f32 %v627, %v681
        %v717 = vadd.f32 %v628, %v684
        %v718 = vadd.f32 %v629, %v686
        %v719 = vadd.f32 %v630, %v689
        %v720 = vadd.f32 %v631, %v691
        %v721 = vadd.f32 %v632, %v694
        %v722 = vadd.f32 %v633, %v696
        %v723 = vadd.f32 %v634, %v699
        %v724 = vadd.f32 %v635, %v701
        %v725 = vadd.f32 %v636, %v704
        %v726 = vadd.f32 %v637, %v706
        %v727 = vadd.f32 %v638, %v709
        %v728 = vadd.f32 %v639, %v711
        %729 = vst [vmem:[#allocation3] sm:$0xff] %v713
        %730 = vst [vmem:[#allocation3 + $0x8] sm:$0xff] %v714
        %731 = vst [vmem:[#allocation3 + $0x10] sm:$0xff] %v715
        %732 = vst [vmem:[#allocation3 + $0x18] sm:$0xff] %v716
        %733 = vst [vmem:[#allocation3 + $0x20] sm:$0xff] %v717
        %734 = vst [vmem:[#allocation3 + $0x28] sm:$0xff] %v718
        %735 = vst [vmem:[#allocation3 + $0x30] sm:$0xff] %v719
        %736 = vst [vmem:[#allocation3 + $0x38] sm:$0xff] %v720
        %737 = vst [vmem:[#allocation3 + $0x40] sm:$0xff] %v721
        %738 = vst [vmem:[#allocation3 + $0x48] sm:$0xff] %v722
        %739 = vst [vmem:[#allocation3 + $0x50] sm:$0xff] %v723
        %740 = vst [vmem:[#allocation3 + $0x58] sm:$0xff] %v724
        %741 = vst [vmem:[#allocation3 + $0x60] sm:$0xff] %v725
        %742 = vst [vmem:[#allocation3 + $0x68] sm:$0xff] %v726
        %743 = vst [vmem:[#allocation3 + $0x70] sm:$0xff] %v727
        %744 = vst [vmem:[#allocation3 + $0x78] sm:$0xff] %v728
        %v745 = vld [vmem:[#allocation4] sm:$0xff]
        %v746 = vld [vmem:[#allocation4 + $0x8] sm:$0xff]
        %v747 = vld [vmem:[#allocation4 + $0x10] sm:$0xff]
        %v748 = vld [vmem:[#allocation4 + $0x18] sm:$0xff]
        %v749 = vld [vmem:[#allocation4 + $0x20] sm:$0xff]
        %v750 = vld [vmem:[#allocation4 + $0x28] sm:$0xff]
        %v751 = vld [vmem:[#allocation4 + $0x30] sm:$0xff]
        %v752 = vld [vmem:[#allocation4 + $0x38] sm:$0xff]
        %v753 = vld [vmem:[#allocation4 + $0x40] sm:$0xff]
        %v754 = vld [vmem:[#allocation4 + $0x48] sm:$0xff]
        %v755 = vld [vmem:[#allocation4 + $0x50] sm:$0xff]
        %v756 = vld [vmem:[#allocation4 + $0x58] sm:$0xff]
        %v757 = vld [vmem:[#allocation4 + $0x60] sm:$0xff]
        %v758 = vld [vmem:[#allocation4 + $0x68] sm:$0xff]
        %v759 = vld [vmem:[#allocation4 + $0x70] sm:$0xff]
        %v760 = vld [vmem:[#allocation4 + $0x78] sm:$0xff]
        %v761 = vld [vmem:[#allocation11] sm:$0xff]
        %v762 = vld [vmem:[#allocation11 + $0x8] sm:$0xff]
        %v763 = vld [vmem:[#allocation11 + $0x10] sm:$0xff]
        %v764 = vld [vmem:[#allocation11 + $0x18] sm:$0xff]
        %v765 = vld [vmem:[#allocation11 + $0x20] sm:$0xff]
        %v766 = vld [vmem:[#allocation11 + $0x28] sm:$0xff]
        %v767 = vld [vmem:[#allocation11 + $0x30] sm:$0xff]
        %v768 = vld [vmem:[#allocation11 + $0x38] sm:$0xff]
        %v769 = vld [vmem:[#allocation11 + $0x40] sm:$0xff]
        %v770 = vld [vmem:[#allocation11 + $0x48] sm:$0xff]
        %v771 = vld [vmem:[#allocation11 + $0x50] sm:$0xff]
        %v772 = vld [vmem:[#allocation11 + $0x58] sm:$0xff]
        %v773 = vld [vmem:[#allocation11 + $0x60] sm:$0xff]
        %v774 = vld [vmem:[#allocation11 + $0x68] sm:$0xff]
        %v775 = vld [vmem:[#allocation11 + $0x70] sm:$0xff]
        %v776 = vld [vmem:[#allocation11 + $0x78] sm:$0xff]
        %v777 = vpack.c.bf16 %v762, %v761
        %v778 = vpack.c.bf16 %v764, %v763
        %v779 = vpack.c.bf16 %v766, %v765
        %v780 = vpack.c.bf16 %v768, %v767
        %v781 = vpack.c.bf16 %v770, %v769
        %v782 = vpack.c.bf16 %v772, %v771
        %v783 = vpack.c.bf16 %v774, %v773
        %v784 = vpack.c.bf16 %v776, %v775
        %785 = vmatpush.bf16.msra.mxu0 %v784
        %786 = vmatpush.bf16.msra.mxu0 %v783
        %787 = vmatpush.bf16.msra.mxu0 %v782
        %788 = vmatpush.bf16.msra.mxu0 %v781
        %789 = vmatpush.bf16.msra.mxu0 %v780
        %790 = vmatpush.bf16.msra.mxu0 %v779
        %791 = vmatpush.bf16.msra.mxu0 %v778
        %792 = vmatpush.bf16.msra.mxu0 %v777
        %793 = vmatmul.bf16.gmra.mxu0 %v495
        %v794 = vpop.f32.mrf.mxu0
        %v795 = vadd.f32 0.0, %v794
        %v796 = vpop.f32.mrf.mxu0
        %v797 = vadd.f32 0.0, %v796
        %798 = vmatmul.bf16.gmra.mxu0 %v496
        %v799 = vpop.f32.mrf.mxu0
        %v800 = vadd.f32 0.0, %v799
        %v801 = vpop.f32.mrf.mxu0
        %v802 = vadd.f32 0.0, %v801
        %803 = vmatmul.bf16.gmra.mxu0 %v497
        %v804 = vpop.f32.mrf.mxu0
        %v805 = vadd.f32 0.0, %v804
        %v806 = vpop.f32.mrf.mxu0
        %v807 = vadd.f32 0.0, %v806
        %808 = vmatmul.bf16.gmra.mxu0 %v498
        %v809 = vpop.f32.mrf.mxu0
        %v810 = vadd.f32 0.0, %v809
        %v811 = vpop.f32.mrf.mxu0
        %v812 = vadd.f32 0.0, %v811
        %813 = vmatmul.bf16.gmra.mxu0 %v499
        %v814 = vpop.f32.mrf.mxu0
        %v815 = vadd.f32 0.0, %v814
        %v816 = vpop.f32.mrf.mxu0
        %v817 = vadd.f32 0.0, %v816
        %818 = vmatmul.bf16.gmra.mxu0 %v500
        %v819 = vpop.f32.mrf.mxu0
        %v820 = vadd.f32 0.0, %v819
        %v821 = vpop.f32.mrf.mxu0
        %v822 = vadd.f32 0.0, %v821
        %823 = vmatmul.bf16.gmra.mxu0 %v501
        %v824 = vpop.f32.mrf.mxu0
        %v825 = vadd.f32 0.0, %v824
        %v826 = vpop.f32.mrf.mxu0
        %v827 = vadd.f32 0.0, %v826
        %828 = vmatmul.bf16.gmra.mxu0 %v502
        %v829 = vpop.f32.mrf.mxu0
        %v830 = vadd.f32 0.0, %v829
        %v831 = vpop.f32.mrf.mxu0
        %v832 = vadd.f32 0.0, %v831
        %833 = vdwg.mxu0
        %v834 = vadd.f32 %v745, %v795
        %v835 = vadd.f32 %v746, %v797
        %v836 = vadd.f32 %v747, %v800
        %v837 = vadd.f32 %v748, %v802
        %v838 = vadd.f32 %v749, %v805
        %v839 = vadd.f32 %v750, %v807
        %v840 = vadd.f32 %v751, %v810
        %v841 = vadd.f32 %v752, %v812
        %v842 = vadd.f32 %v753, %v815
        %v843 = vadd.f32 %v754, %v817
        %v844 = vadd.f32 %v755, %v820
        %v845 = vadd.f32 %v756, %v822
        %v846 = vadd.f32 %v757, %v825
        %v847 = vadd.f32 %v758, %v827
        %v848 = vadd.f32 %v759, %v830
        %v849 = vadd.f32 %v760, %v832
        %850 = vst [vmem:[#allocation4] sm:$0xff] %v834
        %851 = vst [vmem:[#allocation4 + $0x8] sm:$0xff] %v835
        %852 = vst [vmem:[#allocation4 + $0x10] sm:$0xff] %v836
        %853 = vst [vmem:[#allocation4 + $0x18] sm:$0xff] %v837
        %854 = vst [vmem:[#allocation4 + $0x20] sm:$0xff] %v838
        %855 = vst [vmem:[#allocation4 + $0x28] sm:$0xff] %v839
        %856 = vst [vmem:[#allocation4 + $0x30] sm:$0xff] %v840
        %857 = vst [vmem:[#allocation4 + $0x38] sm:$0xff] %v841
        %858 = vst [vmem:[#allocation4 + $0x40] sm:$0xff] %v842
        %859 = vst [vmem:[#allocation4 + $0x48] sm:$0xff] %v843
        %860 = vst [vmem:[#allocation4 + $0x50] sm:$0xff] %v844
        %861 = vst [vmem:[#allocation4 + $0x58] sm:$0xff] %v845
        %862 = vst [vmem:[#allocation4 + $0x60] sm:$0xff] %v846
        %863 = vst [vmem:[#allocation4 + $0x68] sm:$0xff] %v847
        %864 = vst [vmem:[#allocation4 + $0x70] sm:$0xff] %v848
        %865 = vst [vmem:[#allocation4 + $0x78] sm:$0xff] %v849
        // Predicated region
        $region65: #{tpu_custom_call.1} parent=39 // pred_check
          %p866 = pneg %p427
        $region66: #{tpu_custom_call.1} parent=39 // pred_check_branch
          %868 = sbr.rel (%p866) target = $region68
        $region67: #{tpu_custom_call.1} parent=39 // pred_region
          %v869 = vld [vmem:[#allocation2] sm:$0xff]
          %v870 = vld [vmem:[#allocation2 + $0x8] sm:$0xff]
          %v871 = vld [vmem:[#allocation2 + $0x10] sm:$0xff]
          %v872 = vld [vmem:[#allocation2 + $0x18] sm:$0xff]
          %v873 = vld [vmem:[#allocation2 + $0x20] sm:$0xff]
          %v874 = vld [vmem:[#allocation2 + $0x28] sm:$0xff]
          %v875 = vld [vmem:[#allocation2 + $0x30] sm:$0xff]
          %v876 = vld [vmem:[#allocation2 + $0x38] sm:$0xff]
          %v877 = vld [vmem:[#allocation2 + $0x40] sm:$0xff]
          %v878 = vld [vmem:[#allocation2 + $0x48] sm:$0xff]
          %v879 = vld [vmem:[#allocation2 + $0x50] sm:$0xff]
          %v880 = vld [vmem:[#allocation2 + $0x58] sm:$0xff]
          %v881 = vld [vmem:[#allocation2 + $0x60] sm:$0xff]
          %v882 = vld [vmem:[#allocation2 + $0x68] sm:$0xff]
          %v883 = vld [vmem:[#allocation2 + $0x70] sm:$0xff]
          %v884 = vld [vmem:[#allocation2 + $0x78] sm:$0xff]
          %v885 = vld [vmem:[#allocation13] sm:$0x1]
          %v886 = vperm.slane %v885, 0
          %v887 = vadd.f32 %v869, %v886
          %v888 = vadd.f32 %v870, %v886
          %v889 = vadd.f32 %v871, %v886
          %v890 = vadd.f32 %v872, %v886
          %v891 = vadd.f32 %v873, %v886
          %v892 = vadd.f32 %v874, %v886
          %v893 = vadd.f32 %v875, %v886
          %v894 = vadd.f32 %v876, %v886
          %v895 = vadd.f32 %v877, %v886
          %v896 = vadd.f32 %v878, %v886
          %v897 = vadd.f32 %v879, %v886
          %v898 = vadd.f32 %v880, %v886
          %v899 = vadd.f32 %v881, %v886
          %v900 = vadd.f32 %v882, %v886
          %v901 = vadd.f32 %v883, %v886
          %v902 = vadd.f32 %v884, %v886
          %903 = vst [vmem:[%s405] sm:$0xff] %v887
          %904 = vst [vmem:[%s405 + $0x8] sm:$0xff] %v888
          %905 = vst [vmem:[%s405 + $0x10] sm:$0xff] %v889
          %906 = vst [vmem:[%s405 + $0x18] sm:$0xff] %v890
          %907 = vst [vmem:[%s405 + $0x20] sm:$0xff] %v891
          %908 = vst [vmem:[%s405 + $0x28] sm:$0xff] %v892
          %909 = vst [vmem:[%s405 + $0x30] sm:$0xff] %v893
          %910 = vst [vmem:[%s405 + $0x38] sm:$0xff] %v894
          %911 = vst [vmem:[%s405 + $0x40] sm:$0xff] %v895
          %912 = vst [vmem:[%s405 + $0x48] sm:$0xff] %v896
          %913 = vst [vmem:[%s405 + $0x50] sm:$0xff] %v897
          %914 = vst [vmem:[%s405 + $0x58] sm:$0xff] %v898
          %915 = vst [vmem:[%s405 + $0x60] sm:$0xff] %v899
          %916 = vst [vmem:[%s405 + $0x68] sm:$0xff] %v900
          %917 = vst [vmem:[%s405 + $0x70] sm:$0xff] %v901
          %918 = vst [vmem:[%s405 + $0x78] sm:$0xff] %v902
          %v919 = vld [vmem:[#allocation3] sm:$0xff]
          %v920 = vld [vmem:[#allocation3 + $0x8] sm:$0xff]
          %v921 = vld [vmem:[#allocation3 + $0x10] sm:$0xff]
          %v922 = vld [vmem:[#allocation3 + $0x18] sm:$0xff]
          %v923 = vld [vmem:[#allocation3 + $0x20] sm:$0xff]
          %v924 = vld [vmem:[#allocation3 + $0x28] sm:$0xff]
          %v925 = vld [vmem:[#allocation3 + $0x30] sm:$0xff]
          %v926 = vld [vmem:[#allocation3 + $0x38] sm:$0xff]
          %v927 = vld [vmem:[#allocation3 + $0x40] sm:$0xff]
          %v928 = vld [vmem:[#allocation3 + $0x48] sm:$0xff]
          %v929 = vld [vmem:[#allocation3 + $0x50] sm:$0xff]
          %v930 = vld [vmem:[#allocation3 + $0x58] sm:$0xff]
          %v931 = vld [vmem:[#allocation3 + $0x60] sm:$0xff]
          %v932 = vld [vmem:[#allocation3 + $0x68] sm:$0xff]
          %v933 = vld [vmem:[#allocation3 + $0x70] sm:$0xff]
          %v934 = vld [vmem:[#allocation3 + $0x78] sm:$0xff]
          %v935 = vld [vmem:[#allocation13 + $0x1] sm:$0x1]
          %v936 = vperm.slane %v935, 0
          %v937 = vadd.f32 %v919, %v936
          %v938 = vadd.f32 %v920, %v936
          %v939 = vadd.f32 %v921, %v936
          %v940 = vadd.f32 %v922, %v936
          %v941 = vadd.f32 %v923, %v936
          %v942 = vadd.f32 %v924, %v936
          %v943 = vadd.f32 %v925, %v936
          %v944 = vadd.f32 %v926, %v936
          %v945 = vadd.f32 %v927, %v936
          %v946 = vadd.f32 %v928, %v936
          %v947 = vadd.f32 %v929, %v936
          %v948 = vadd.f32 %v930, %v936
          %v949 = vadd.f32 %v931, %v936
          %v950 = vadd.f32 %v932, %v936
          %v951 = vadd.f32 %v933, %v936
          %v952 = vadd.f32 %v934, %v936
          %953 = vst [vmem:[%s412] sm:$0xff] %v937
          %954 = vst [vmem:[%s412 + $0x8] sm:$0xff] %v938
          %955 = vst [vmem:[%s412 + $0x10] sm:$0xff] %v939
          %956 = vst [vmem:[%s412 + $0x18] sm:$0xff] %v940
          %957 = vst [vmem:[%s412 + $0x20] sm:$0xff] %v941
          %958 = vst [vmem:[%s412 + $0x28] sm:$0xff] %v942
          %959 = vst [vmem:[%s412 + $0x30] sm:$0xff] %v943
          %960 = vst [vmem:[%s412 + $0x38] sm:$0xff] %v944
          %961 = vst [vmem:[%s412 + $0x40] sm:$0xff] %v945
          %962 = vst [vmem:[%s412 + $0x48] sm:$0xff] %v946
          %963 = vst [vmem:[%s412 + $0x50] sm:$0xff] %v947
          %964 = vst [vmem:[%s412 + $0x58] sm:$0xff] %v948
          %965 = vst [vmem:[%s412 + $0x60] sm:$0xff] %v949
          %966 = vst [vmem:[%s412 + $0x68] sm:$0xff] %v950
          %967 = vst [vmem:[%s412 + $0x70] sm:$0xff] %v951
          %968 = vst [vmem:[%s412 + $0x78] sm:$0xff] %v952
          %v969 = vld [vmem:[#allocation4] sm:$0xff]
          %v970 = vld [vmem:[#allocation4 + $0x8] sm:$0xff]
          %v971 = vld [vmem:[#allocation4 + $0x10] sm:$0xff]
          %v972 = vld [vmem:[#allocation4 + $0x18] sm:$0xff]
          %v973 = vld [vmem:[#allocation4 + $0x20] sm:$0xff]
          %v974 = vld [vmem:[#allocation4 + $0x28] sm:$0xff]
          %v975 = vld [vmem:[#allocation4 + $0x30] sm:$0xff]
          %v976 = vld [vmem:[#allocation4 + $0x38] sm:$0xff]
          %v977 = vld [vmem:[#allocation4 + $0x40] sm:$0xff]
          %v978 = vld [vmem:[#allocation4 + $0x48] sm:$0xff]
          %v979 = vld [vmem:[#allocation4 + $0x50] sm:$0xff]
          %v980 = vld [vmem:[#allocation4 + $0x58] sm:$0xff]
          %v981 = vld [vmem:[#allocation4 + $0x60] sm:$0xff]
          %v982 = vld [vmem:[#allocation4 + $0x68] sm:$0xff]
          %v983 = vld [vmem:[#allocation4 + $0x70] sm:$0xff]
          %v984 = vld [vmem:[#allocation4 + $0x78] sm:$0xff]
          %v985 = vld [vmem:[#allocation13 + $0x2] sm:$0x1]
          %v986 = vperm.slane %v985, 0
          %v987 = vadd.f32 %v969, %v986
          %v988 = vadd.f32 %v970, %v986
          %v989 = vadd.f32 %v971, %v986
          %v990 = vadd.f32 %v972, %v986
          %v991 = vadd.f32 %v973, %v986
          %v992 = vadd.f32 %v974, %v986
          %v993 = vadd.f32 %v975, %v986
          %v994 = vadd.f32 %v976, %v986
          %v995 = vadd.f32 %v977, %v986
          %v996 = vadd.f32 %v978, %v986
          %v997 = vadd.f32 %v979, %v986
          %v998 = vadd.f32 %v980, %v986
          %v999 = vadd.f32 %v981, %v986
          %v1000 = vadd.f32 %v982, %v986
          %v1001 = vadd.f32 %v983, %v986
          %v1002 = vadd.f32 %v984, %v986
          %1003 = vst [vmem:[%s419] sm:$0xff] %v987
          %1004 = vst [vmem:[%s419 + $0x8] sm:$0xff] %v988
          %1005 = vst [vmem:[%s419 + $0x10] sm:$0xff] %v989
          %1006 = vst [vmem:[%s419 + $0x18] sm:$0xff] %v990
          %1007 = vst [vmem:[%s419 + $0x20] sm:$0xff] %v991
          %1008 = vst [vmem:[%s419 + $0x28] sm:$0xff] %v992
          %1009 = vst [vmem:[%s419 + $0x30] sm:$0xff] %v993
          %1010 = vst [vmem:[%s419 + $0x38] sm:$0xff] %v994
          %1011 = vst [vmem:[%s419 + $0x40] sm:$0xff] %v995
          %1012 = vst [vmem:[%s419 + $0x48] sm:$0xff] %v996
          %1013 = vst [vmem:[%s419 + $0x50] sm:$0xff] %v997
          %1014 = vst [vmem:[%s419 + $0x58] sm:$0xff] %v998
          %1015 = vst [vmem:[%s419 + $0x60] sm:$0xff] %v999
          %1016 = vst [vmem:[%s419 + $0x68] sm:$0xff] %v1000
          %1017 = vst [vmem:[%s419 + $0x70] sm:$0xff] %v1001
          %1018 = vst [vmem:[%s419 + $0x78] sm:$0xff] %v1002
        $region68: #{tpu_custom_call.1} parent=39 // pred_fallthru
          _
        %s1019 = sand.u32 %s177, 1
        %s1020 = scalar_lea.sflag [#allocation7], %s1019
        %s1021 = sand.u32 %s177, 1
        %s1022 = smul.addr %s1021, 128
        %s1023 = scalar_lea.vmem [#allocation14], %s1022
        %s1024 = sand.u32 %s30, 1
        %s1025 = scalar_lea.sflag [#allocation16], %s1024
        %s1026 = sand.u32 %s203, 1
        %s1027 = smul.addr %s1026, 128
        %s1028 = scalar_lea.vmem [#allocation15], %s1027
        %s1029 = sand.u32 %s30, 1
        %s1030 = scalar_lea.sflag [#allocation16], %s1029
        %s1031 = sand.u32 %s229, 1
        %s1032 = smul.addr %s1031, 128
        %s1033 = scalar_lea.vmem [#allocation17], %s1032
        // Predicated region
        $region69: #{tpu_custom_call.1} parent=39 // pred_check
          %p1034 = pneg %p187
        $region70: #{tpu_custom_call.1} parent=39 // pred_check_branch
          %1036 = sbr.rel (%p1034) target = $region72
        $region71: #{tpu_custom_call.1} parent=39 // pred_region
          %s1037 = smul.u32 16, %s34
          %1039 = vsyncadd %s1020, 0
          %s1040 = smul.addr %s1037, 8
          %s1041 = scalar_lea.hbm %s5, %s1040
          %s1042 = sshll.u32 %s1023, 4
          %s1043 = int_to_ptr.vmem [resolvable:$true] %s1042
          %s1044 = sshll.u32 %s1041, 4
          %s1045 = int_to_ptr.hbm [resolvable:$true] %s1044
          %1050 = dma.vmem_to_hbm [thread:$0]  %s1043, 2048, %s1045, %s1020, 128, 128, 8
        $region72: #{tpu_custom_call.1} parent=39 // pred_fallthru
          _
        // Predicated region
        $region73: #{tpu_custom_call.1} parent=39 // pred_check
          %p1051 = pneg %p213
        $region74: #{tpu_custom_call.1} parent=39 // pred_check_branch
          %1053 = sbr.rel (%p1051) target = $region76
        $region75: #{tpu_custom_call.1} parent=39 // pred_region
          %s1054 = smul.u32 16, %s34
          %1056 = vsyncadd %s1025, 0
          %s1057 = smul.addr %s1054, 8
          %s1058 = scalar_lea.hbm %s6, %s1057
          %s1059 = sshll.u32 %s1028, 4
          %s1060 = int_to_ptr.vmem [resolvable:$true] %s1059
          %s1061 = sshll.u32 %s1058, 4
          %s1062 = int_to_ptr.hbm [resolvable:$true] %s1061
          %1067 = dma.vmem_to_hbm [thread:$0]  %s1060, 2048, %s1062, %s1025, 128, 128, 8
        $region76: #{tpu_custom_call.1} parent=39 // pred_fallthru
          _
        // Predicated region
        $region77: #{tpu_custom_call.1} parent=39 // pred_check
          %p1068 = pneg %p239
        $region78: #{tpu_custom_call.1} parent=39 // pred_check_branch
          %1070 = sbr.rel (%p1068) target = $region80
        $region79: #{tpu_custom_call.1} parent=39 // pred_region
          %s1071 = smul.u32 16, %s34
          %1073 = vsyncadd %s1030, 0
          %s1074 = smul.addr %s1071, 8
          %s1075 = scalar_lea.hbm %s7, %s1074
          %s1076 = sshll.u32 %s1033, 4
          %s1077 = int_to_ptr.vmem [resolvable:$true] %s1076
          %s1078 = sshll.u32 %s1075, 4
          %s1079 = int_to_ptr.hbm [resolvable:$true] %s1078
          %1084 = dma.vmem_to_hbm [thread:$0]  %s1077, 2048, %s1079, %s1030, 128, 128, 8
        $region80: #{tpu_custom_call.1} parent=39 // pred_fallthru
          _
      $region40: #{tpu_custom_call.1} parent=5 // pred_fallthru
        _
      %p1085 = scmp.le.s32.totalorder 2, %s25
      // Predicated region
      $region81: #{tpu_custom_call.1} parent=5 // pred_check
        %p1086 = pneg %p1085
      $region82: #{tpu_custom_call.1} parent=5 // pred_check_branch
        %1088 = sbr.rel (%p1086) target = $region84
      $region83: #{tpu_custom_call.1} parent=5 // pred_region
        %s1089 = ssub.s32 %s25, 2
        // Predicated region
        $region85: #{tpu_custom_call.1} parent=83 // pred_check
          %p1090 = pneg %p193
        $region86: #{tpu_custom_call.1} parent=83 // pred_check_branch
          %1092 = sbr.rel (%p1090) target = $region88
        $region87: #{tpu_custom_call.1} parent=83 // pred_region
          %s1093 = sand.u32 %s178, 1
          %s1094 = scalar_lea.sflag [#allocation7], %s1093
          %s1095 = sand.u32 %s178, 1
          %s1096 = smul.addr %s1095, 128
          %s1097 = scalar_lea.vmem [#allocation14], %s1096
          %1099 = dma.done %s1094, 2048
        $region88: #{tpu_custom_call.1} parent=83 // pred_fallthru
          _
        // Predicated region
        $region89: #{tpu_custom_call.1} parent=83 // pred_check
          %p1100 = pneg %p219
        $region90: #{tpu_custom_call.1} parent=83 // pred_check_branch
          %1102 = sbr.rel (%p1100) target = $region92
        $region91: #{tpu_custom_call.1} parent=83 // pred_region
          %s1103 = sand.u32 %s31, 1
          %s1104 = scalar_lea.sflag [#allocation16], %s1103
          %s1105 = sand.u32 %s204, 1
          %s1106 = smul.addr %s1105, 128
          %s1107 = scalar_lea.vmem [#allocation15], %s1106
          %1109 = dma.done %s1104, 2048
        $region92: #{tpu_custom_call.1} parent=83 // pred_fallthru
          _
        // Predicated region
        $region93: #{tpu_custom_call.1} parent=83 // pred_check
          %p1110 = pneg %p245
        $region94: #{tpu_custom_call.1} parent=83 // pred_check_branch
          %1112 = sbr.rel (%p1110) target = $region96
        $region95: #{tpu_custom_call.1} parent=83 // pred_region
          %s1113 = sand.u32 %s31, 1
          %s1114 = scalar_lea.sflag [#allocation16], %s1113
          %s1115 = sand.u32 %s230, 1
          %s1116 = smul.addr %s1115, 128
          %s1117 = scalar_lea.vmem [#allocation17], %s1116
          %1119 = dma.done %s1114, 2048
        $region96: #{tpu_custom_call.1} parent=83 // pred_fallthru
          _
      $region84: #{tpu_custom_call.1} parent=5 // pred_fallthru
        _
    $region6: #{tpu_custom_call.1} parent=1 // loop_footer
      %s29 = sadd.s32 1, %s25
    $region7: #{tpu_custom_call.1} parent=1 // loop_footer_branch
      %24 = sbr.rel target = $region3
    $region8: #{tpu_custom_call.1} parent=1 // loop_exit
      _
    %1120 = vsyncpa [#allocation6], 1
    %s1121 = scalar_lea.sflag [#allocation6], 1
    %1122 = vsyncpa %s1121, 1
    %1123 = vsyncpa [#allocation9], 1
    %1124 = vsyncpa [#allocation12], 1
    %1125 = vsyncpa [#allocation7], 1
    %s1126 = scalar_lea.sflag [#allocation7], 1
    %1127 = vsyncpa %s1126, 1
    %1128 = vsyncpa [#allocation16], 1
    %s1129 = scalar_lea.sflag [#allocation16], 1
    %1130 = vsyncpa %s1129, 1

</llo_original>
